<compile_context>
chip_gen: v5e
topology: v5e:2x2
jax: 0.10.0
libtpu: 0.0.40
codegen_flags: <defaults>
</compile_context>

<pallas_src>
import jax
import jax.numpy as jnp
from jax.experimental import pallas as pl
from jax.experimental.pallas import tpu as pltpu


def prepare_dwconv_params(weight, bias, W):
    """Pre-tile depthwise weights/bias across W (call once at init, not per step).

    weight: (C, 3, 3)  (nn.Conv2d(dim, dim, 3, groups=dim).weight squeezed)
    bias:   (C,)
    returns w_vec (9, W*C) f32, b_vec (1, W*C) f32.
    """
    C = weight.shape[0]
    w_hwc = jnp.transpose(weight.astype(jnp.float32), (1, 2, 0))       # (3, 3, C)
    w_vec = jnp.tile(w_hwc.reshape(9, 1, C), (1, W, 1)).reshape(9, W * C)
    b_vec = jnp.tile(bias.astype(jnp.float32).reshape(1, C), (W, 1)).reshape(1, W * C)
    return w_vec, b_vec


def _pick_tile_h(H, WC, itemsize, budget_bytes=12 << 20):
    """Largest H-tile whose per-step VMEM (2x in blk + 2x out blk + scratch)
    stays inside a conservative budget (fits v5e's 16 MiB scoped default and
    leaves double-buffer headroom under v7x's 64 MiB physical VMEM)."""
    per_row = (4 * WC + (WC + 256)) * itemsize
    max_rows = max(8, budget_bytes // max(per_row, 1))
    if H <= max_rows:
        return H                           # full image per grid step (preferred)
    cands = [t for t in range(8, H, 8) if H % t == 0 and t <= max_rows]
    return max(cands) if cands else H


def dwconv_forward(x, w_vec, b_vec, H, W, *, tile_h=None):
    """Depthwise 3x3 conv, stride 1, pad 1, + bias (PyTorch DWConv.forward).

    x:     (B, N, C) with N == H*W ; returns (B, N, C), same dtype as x.
    w_vec, b_vec: outputs of prepare_dwconv_params.
    """
    B, N, C = x.shape
    assert N == H * W, "sequence length must equal H*W"
    WC = W * C
    xr = x.reshape(B, H, WC)               # (B, N, C) row-major == (B, H, W*C)

    TH = tile_h if tile_h is not None else _pick_tile_h(H, WC, x.dtype.itemsize)
    assert H % TH == 0 and (TH % 8 == 0 or TH == H), "bad H tile"
    n_t = H // TH
    RC = 8 if TH >= 8 else TH              # register-chunk rows (acc ~4 vregs)
    PAD = ((C + 127) // 128) * 128         # lane-aligned zero border, >= C
    XPW = PAD + WC + PAD

    def kernel(x_ref, xhbm_ref, w_ref, b_ref, o_ref, xp_ref, hbuf, hsem):
        b = pl.program_id(0)
        i = pl.program_id(1)
        last = pl.num_programs(1) - 1

        # Kick off the two halo-row DMAs straight from x in HBM; they fly while
        # the padded scratch tile is being built below.
        @pl.when(i > 0)
        def _():
            pltpu.make_async_copy(
                xhbm_ref.at[b, pl.ds(i * TH - 1, 1), :], hbuf.at[0:1, :], hsem.at[0]
            ).start()

        @pl.when(i < last)
        def _():
            pltpu.make_async_copy(
                xhbm_ref.at[b, pl.ds((i + 1) * TH, 1), :], hbuf.at[1:2, :], hsem.at[1]
            ).start()

        # Build the zero-padded tile in VMEM.  PAD is a multiple of 128, so the
        # stripe stores and the body store are lane-aligned full-width vst
        # (no vst.msk).  Stripes are rewritten every step so the kernel is safe
        # under megacore grid partitioning.
        xp_ref[:, 0:PAD] = jnp.zeros((TH + 2, PAD), dtype=xp_ref.dtype)
        xp_ref[:, PAD + WC:] = jnp.zeros((TH + 2, PAD), dtype=xp_ref.dtype)
        xp_ref[1:TH + 1, PAD:PAD + WC] = x_ref[0]      # body rows, no dtype cast

        # Halo rows (H-direction zero padding at the image border, otherwise the
        # DMA'd neighbouring rows).
        @pl.when(i == 0)
        def _():
            xp_ref[0:1, PAD:PAD + WC] = jnp.zeros((1, WC), dtype=xp_ref.dtype)

        @pl.when(i > 0)
        def _():
            pltpu.make_async_copy(
                xhbm_ref.at[b, pl.ds(i * TH - 1, 1), :], hbuf.at[0:1, :], hsem.at[0]
            ).wait()
            xp_ref[0:1, PAD:PAD + WC] = hbuf[0:1, :]

        @pl.when(i == last)
        def _():
            xp_ref[TH + 1:TH + 2, PAD:PAD + WC] = jnp.zeros((1, WC), dtype=xp_ref.dtype)

        @pl.when(i < last)
        def _():
            pltpu.make_async_copy(
                xhbm_ref.at[b, pl.ds((i + 1) * TH, 1), :], hbuf.at[1:2, :], hsem.at[1]
            ).wait()
            xp_ref[TH + 1:TH + 2, PAD:PAD + WC] = hbuf[1:2, :]

        # 9-tap depthwise MAC on the VPU, chunked over RC output rows so the f32
        # accumulator and window views stay inside the vreg file even when TH is
        # the full image.  Per chunk: one lane-shifted f32 view per kw (3 views,
        # only 2 actually shifted), then kh taps are plain sublane slices.
        w = w_ref[...]                      # (9, WC) f32, hoisted out of the loop
        b_row = b_ref[0, :]                 # (WC,)   f32
        r0 = 0
        while r0 < TH:                      # static Python loop, few iterations
            rc = min(RC, TH - r0)
            views = [
                xp_ref[r0:r0 + rc + 2,
                       PAD - C + kw * C:PAD - C + kw * C + WC].astype(jnp.float32)
                for kw in range(3)
            ]
            acc = jnp.broadcast_to(b_row, (rc, WC))    # bias-initialized acc
            for kh in range(3):
                for kw in range(3):
                    acc = acc + views[kw][kh:kh + rc, :] * w[3 * kh + kw]
            o_ref[0, r0:r0 + rc, :] = acc.astype(o_ref.dtype)
            r0 += rc

    out = pl.pallas_call(
        kernel,
        out_shape=jax.ShapeDtypeStruct((B, H, WC), x.dtype),
        grid_spec=pltpu.PrefetchScalarGridSpec(
            num_scalar_prefetch=0,
            grid=(B, n_t),
            in_specs=[
                pl.BlockSpec((1, TH, WC), lambda b, i: (b, i, 0)),   # body rows
                pl.BlockSpec(memory_space=pl.ANY),                   # x in HBM (halo DMA)
                pl.BlockSpec((9, WC), lambda b, i: (0, 0)),          # weights
                pl.BlockSpec((1, WC), lambda b, i: (0, 0)),          # bias
            ],
            out_specs=pl.BlockSpec((1, TH, WC), lambda b, i: (b, i, 0)),
            scratch_shapes=[
                pltpu.VMEM((TH + 2, XPW), x.dtype),   # zero-padded tile
                pltpu.VMEM((2, WC), x.dtype),         # halo-row landing buffer
                pltpu.SemaphoreType.DMA((2,)),
            ],
        ),
        compiler_params=pltpu.CompilerParams(
            dimension_semantics=("parallel", "parallel")),
    )(xr, xr, w_vec, b_vec)

    return out.reshape(B, N, C)


def _reference(x, weight, bias, H, W):
    """Plain-JAX reference of the PyTorch forward (NCHW depthwise conv)."""
    B, N, C = x.shape
    x_nchw = jnp.transpose(x, (0, 2, 1)).reshape(B, C, H, W)
    k = weight.reshape(C, 1, 3, 3)
    y = jax.lax.conv_general_dilated(
        x_nchw, k, window_strides=(1, 1), padding=((1, 1), (1, 1)),
        dimension_numbers=("NCHW", "OIHW", "NCHW"), feature_group_count=C)
    y = y + bias.reshape(1, C, 1, 1)
    return jnp.transpose(y.reshape(B, C, N), (0, 2, 1))


if __name__ == "__main__":
    B, H, W, C = 2, 16, 16, 32
    N = H * W

    key = jax.random.PRNGKey(0)
    kx, kw, kb = jax.random.split(key, 3)
    x = jax.random.normal(kx, (B, N, C), dtype=jnp.float32)
    # nn.Conv2d(dim, dim, 3, groups=dim) weight (dim, 1, 3, 3) -> squeezed (C, 3, 3)
    weight = jax.random.normal(kw, (C, 3, 3), dtype=jnp.float32) * 0.1
    bias = jax.random.normal(kb, (C,), dtype=jnp.float32) * 0.1

    ref = _reference(x, weight, bias, H, W)

    # Params pre-tiled once (hoisted out of the per-call hot path).
    w_vec, b_vec = prepare_dwconv_params(weight, bias, W)

    # 1) Default tiling: full image per grid step (largest block, no halo DMA).
    out = jax.block_until_ready(dwconv_forward(x, w_vec, b_vec, H, W))
    assert out.shape == (B, N, C)
    assert jnp.allclose(out, ref, atol=1e-4, rtol=1e-4)

    # 2) H-tiled path (tile_h=8): exercises the in-kernel halo-row DMAs.
    out_t = jax.block_until_ready(dwconv_forward(x, w_vec, b_vec, H, W, tile_h=8))
    assert jnp.allclose(out_t, ref, atol=1e-4, rtol=1e-4)

    # 3) bf16 storage path: bf16 activations / bf16 scratch in VMEM, f32 taps &
    #    accumulation, bf16 output.
    xb = x.astype(jnp.bfloat16)
    wbv, bbv = prepare_dwconv_params(weight.astype(jnp.bfloat16),
                                     bias.astype(jnp.bfloat16), W)
    ref_bf = _reference(xb.astype(jnp.float32),
                        weight.astype(jnp.bfloat16).astype(jnp.float32),
                        bias.astype(jnp.bfloat16).astype(jnp.float32), H, W)
    out_bf = jax.block_until_ready(dwconv_forward(xb, wbv, bbv, H, W, tile_h=8))
    assert out_bf.dtype == jnp.bfloat16
    assert jnp.allclose(out_bf.astype(jnp.float32), ref_bf, atol=2e-2, rtol=2e-2)

    print("KERNEL_OK")
</pallas_src>

<mosaic_0001>
module attributes {stable_mosaic.version = 11 : i64} {
  func.func @kernel(%arg0: i32, %arg1: i32, %arg2: memref<1x16x512xf32, #tpu.memory_space<vmem>>, %arg3: memref<2x16x512xf32, #tpu.memory_space<any>>, %arg4: memref<9x512xf32, #tpu.memory_space<vmem>>, %arg5: memref<1x512xf32, #tpu.memory_space<vmem>>, %arg6: memref<1x16x512xf32, #tpu.memory_space<vmem>>, %arg7: memref<18x768xf32, #tpu.memory_space<vmem>>, %arg8: memref<2x512xf32, #tpu.memory_space<vmem>>, %arg9: memref<2x!tpu.dma_semaphore, #tpu.memory_space<semaphore_mem>>) attributes {dimension_semantics = [#tpu.dimension_semantics<parallel>, #tpu.dimension_semantics<parallel>], iteration_bounds = array<i64: 2, 1>, scalar_prefetch = 0 : i64, scratch_operands = 3 : i64, tpu.core_type = #tpu.core_type<tc>, window_params = [{transform_indices = @transform_0, window_bounds = array<i64: 1, 16, 512>}, {}, {pipeline_mode = #tpu.pipeline_mode<synchronous>, transform_indices = @transform_2, window_bounds = array<i64: 9, 512>}, {pipeline_mode = #tpu.pipeline_mode<synchronous>, transform_indices = @transform_3, window_bounds = array<i64: 1, 512>}, {transform_indices = @transform_4, window_bounds = array<i64: 1, 16, 512>}]} {
    %c0_i32 = arith.constant 0 : i32
    %0 = arith.cmpi sgt, %arg1, %c0_i32 : i32
    %1 = arith.extui %0 : i1 to i32
    %c0_i32_0 = arith.constant 0 : i32
    %2 = arith.cmpi ne, %1, %c0_i32_0 : i32
    scf.if %2 {
      %c16_i32 = arith.constant 16 : i32
      %170 = arith.muli %arg1, %c16_i32 : i32
      %c1_i32 = arith.constant 1 : i32
      %171 = arith.subi %170, %c1_i32 : i32
      %c0_i32_36 = arith.constant 0 : i32
      %c0_i32_37 = arith.constant 0 : i32
      %172 = tpu.memref_slice %arg3[%arg0, %171, %c0_i32_37] : memref<2x16x512xf32, #tpu.memory_space<any>> -> memref<1x1x512xf32, #tpu.memory_space<any>>
      %173 = tpu.memref_squeeze %172 : memref<1x1x512xf32, #tpu.memory_space<any>> -> memref<1x512xf32, #tpu.memory_space<any>>
      %c0_i32_38 = arith.constant 0 : i32
      %c0_i32_39 = arith.constant 0 : i32
      %174 = tpu.memref_slice %arg8[%c0_i32_38, %c0_i32_39] : memref<2x512xf32, #tpu.memory_space<vmem>> -> memref<1x512xf32, #tpu.memory_space<vmem>>
      %175 = tpu.memref_slice %arg9[%c0_i32_36] : memref<2x!tpu.dma_semaphore, #tpu.memory_space<semaphore_mem>> -> memref<1x!tpu.dma_semaphore, #tpu.memory_space<semaphore_mem>>
      %176 = tpu.memref_squeeze %175 : memref<1x!tpu.dma_semaphore, #tpu.memory_space<semaphore_mem>> -> memref<!tpu.dma_semaphore, #tpu.memory_space<semaphore_mem>>
      tpu.enqueue_dma source(%173 : memref<1x512xf32, #tpu.memory_space<any>>) target(%174 : memref<1x512xf32, #tpu.memory_space<vmem>>) target_semaphore(%176 : memref<!tpu.dma_semaphore, #tpu.memory_space<semaphore_mem>>)
    } else {
    }
    %c0_i32_1 = arith.constant 0 : i32
    %3 = arith.cmpi slt, %arg1, %c0_i32_1 : i32
    %4 = arith.extui %3 : i1 to i32
    %c0_i32_2 = arith.constant 0 : i32
    %5 = arith.cmpi ne, %4, %c0_i32_2 : i32
    scf.if %5 {
      %c1_i32 = arith.constant 1 : i32
      %170 = arith.addi %arg1, %c1_i32 : i32
      %c16_i32 = arith.constant 16 : i32
      %171 = arith.muli %170, %c16_i32 : i32
      %c1_i32_36 = arith.constant 1 : i32
      %c0_i32_37 = arith.constant 0 : i32
      %172 = tpu.memref_slice %arg3[%arg0, %171, %c0_i32_37] : memref<2x16x512xf32, #tpu.memory_space<any>> -> memref<1x1x512xf32, #tpu.memory_space<any>>
      %173 = tpu.memref_squeeze %172 : memref<1x1x512xf32, #tpu.memory_space<any>> -> memref<1x512xf32, #tpu.memory_space<any>>
      %c1_i32_38 = arith.constant 1 : i32
      %c0_i32_39 = arith.constant 0 : i32
      %174 = tpu.memref_slice %arg8[%c1_i32_38, %c0_i32_39] : memref<2x512xf32, #tpu.memory_space<vmem>> -> memref<1x512xf32, #tpu.memory_space<vmem>>
      %175 = tpu.memref_slice %arg9[%c1_i32_36] : memref<2x!tpu.dma_semaphore, #tpu.memory_space<semaphore_mem>> -> memref<1x!tpu.dma_semaphore, #tpu.memory_space<semaphore_mem>>
      %176 = tpu.memref_squeeze %175 : memref<1x!tpu.dma_semaphore, #tpu.memory_space<semaphore_mem>> -> memref<!tpu.dma_semaphore, #tpu.memory_space<semaphore_mem>>
      tpu.enqueue_dma source(%173 : memref<1x512xf32, #tpu.memory_space<any>>) target(%174 : memref<1x512xf32, #tpu.memory_space<vmem>>) target_semaphore(%176 : memref<!tpu.dma_semaphore, #tpu.memory_space<semaphore_mem>>)
    } else {
    }
    %cst = arith.constant 0.000000e+00 : f32
    %6 = vector.broadcast %cst : f32 to vector<18x128xf32>
    %c0 = arith.constant 0 : index
    %c0_3 = arith.constant 0 : index
    %7 = vector.load %arg7[%c0, %c0_3] : memref<18x768xf32, #tpu.memory_space<vmem>>, vector<18x128xf32>
    tpu.vector_store %arg7[%c0, %c0_3], %6 {strides = array<i32>} : memref<18x768xf32, #tpu.memory_space<vmem>>, vector<18x128xf32>,
    %cst_4 = arith.constant 0.000000e+00 : f32
    %8 = vector.broadcast %cst_4 : f32 to vector<18x128xf32>
    %c0_5 = arith.constant 0 : index
    %c640 = arith.constant 640 : index
    %9 = vector.load %arg7[%c0_5, %c640] : memref<18x768xf32, #tpu.memory_space<vmem>>, vector<18x128xf32>
    tpu.vector_store %arg7[%c0_5, %c640], %8 {strides = array<i32>} : memref<18x768xf32, #tpu.memory_space<vmem>>, vector<18x128xf32>,
    %c0_6 = arith.constant 0 : index
    %c0_7 = arith.constant 0 : index
    %c0_8 = arith.constant 0 : index
    %10 = vector.load %arg2[%c0_6, %c0_7, %c0_8] : memref<1x16x512xf32, #tpu.memory_space<vmem>>, vector<1x16x512xf32>
    %11 = vector.shape_cast %10 : vector<1x16x512xf32> to vector<16x512xf32>
    %c1 = arith.constant 1 : index
    %c128 = arith.constant 128 : index
    %12 = vector.load %arg7[%c1, %c128] : memref<18x768xf32, #tpu.memory_space<vmem>>, vector<16x512xf32>
    tpu.vector_store %arg7[%c1, %c128], %11 {strides = array<i32>} : memref<18x768xf32, #tpu.memory_space<vmem>>, vector<16x512xf32>,
    %c0_i32_9 = arith.constant 0 : i32
    %13 = arith.cmpi eq, %arg1, %c0_i32_9 : i32
    %14 = arith.extui %13 : i1 to i32
    %c0_i32_10 = arith.constant 0 : i32
    %15 = arith.cmpi ne, %14, %c0_i32_10 : i32
    scf.if %15 {
      %cst_36 = arith.constant 0.000000e+00 : f32
      %170 = vector.broadcast %cst_36 : f32 to vector<1x512xf32>
      %c0_37 = arith.constant 0 : index
      %c128_38 = arith.constant 128 : index
      %171 = vector.load %arg7[%c0_37, %c128_38] : memref<18x768xf32, #tpu.memory_space<vmem>>, vector<1x512xf32>
      tpu.vector_store %arg7[%c0_37, %c128_38], %170 {strides = array<i32>} : memref<18x768xf32, #tpu.memory_space<vmem>>, vector<1x512xf32>,
    } else {
    }
    %c0_i32_11 = arith.constant 0 : i32
    %16 = arith.cmpi sgt, %arg1, %c0_i32_11 : i32
    %17 = arith.extui %16 : i1 to i32
    %c0_i32_12 = arith.constant 0 : i32
    %18 = arith.cmpi ne, %17, %c0_i32_12 : i32
    scf.if %18 {
      %c16_i32 = arith.constant 16 : i32
      %170 = arith.muli %arg1, %c16_i32 : i32
      %c1_i32 = arith.constant 1 : i32
      %171 = arith.subi %170, %c1_i32 : i32
      %c0_i32_36 = arith.constant 0 : i32
      %c0_i32_37 = arith.constant 0 : i32
      %172 = tpu.memref_slice %arg3[%arg0, %171, %c0_i32_37] : memref<2x16x512xf32, #tpu.memory_space<any>> -> memref<1x1x512xf32, #tpu.memory_space<any>>
      %173 = tpu.memref_squeeze %172 : memref<1x1x512xf32, #tpu.memory_space<any>> -> memref<1x512xf32, #tpu.memory_space<any>>
      %c0_i32_38 = arith.constant 0 : i32
      %c0_i32_39 = arith.constant 0 : i32
      %174 = tpu.memref_slice %arg8[%c0_i32_38, %c0_i32_39] : memref<2x512xf32, #tpu.memory_space<vmem>> -> memref<1x512xf32, #tpu.memory_space<vmem>>
      %175 = tpu.memref_slice %arg9[%c0_i32_36] : memref<2x!tpu.dma_semaphore, #tpu.memory_space<semaphore_mem>> -> memref<1x!tpu.dma_semaphore, #tpu.memory_space<semaphore_mem>>
      %176 = tpu.memref_squeeze %175 : memref<1x!tpu.dma_semaphore, #tpu.memory_space<semaphore_mem>> -> memref<!tpu.dma_semaphore, #tpu.memory_space<semaphore_mem>>
      tpu.wait_dma2 semaphore(%176 : memref<!tpu.dma_semaphore, #tpu.memory_space<semaphore_mem>>) src(%173 : memref<1x512xf32, #tpu.memory_space<any>>) dst(%174 : memref<1x512xf32, #tpu.memory_space<vmem>>)
      %c0_40 = arith.constant 0 : index
      %c0_41 = arith.constant 0 : index
      %177 = vector.load %arg8[%c0_40, %c0_41] : memref<2x512xf32, #tpu.memory_space<vmem>>, vector<1x512xf32>
      %c0_42 = arith.constant 0 : index
      %c128_43 = arith.constant 128 : index
      %178 = vector.load %arg7[%c0_42, %c128_43] : memref<18x768xf32, #tpu.memory_space<vmem>>, vector<1x512xf32>
      tpu.vector_store %arg7[%c0_42, %c128_43], %177 {strides = array<i32>} : memref<18x768xf32, #tpu.memory_space<vmem>>, vector<1x512xf32>,
    } else {
    }
    %c0_i32_13 = arith.constant 0 : i32
    %19 = arith.cmpi eq, %arg1, %c0_i32_13 : i32
    %20 = arith.extui %19 : i1 to i32
    %c0_i32_14 = arith.constant 0 : i32
    %21 = arith.cmpi ne, %20, %c0_i32_14 : i32
    scf.if %21 {
      %cst_36 = arith.constant 0.000000e+00 : f32
      %170 = vector.broadcast %cst_36 : f32 to vector<1x512xf32>
      %c17 = arith.constant 17 : index
      %c128_37 = arith.constant 128 : index
      %171 = vector.load %arg7[%c17, %c128_37] : memref<18x768xf32, #tpu.memory_space<vmem>>, vector<1x512xf32>
      tpu.vector_store %arg7[%c17, %c128_37], %170 {strides = array<i32>} : memref<18x768xf32, #tpu.memory_space<vmem>>, vector<1x512xf32>,
    } else {
    }
    %c0_i32_15 = arith.constant 0 : i32
    %22 = arith.cmpi slt, %arg1, %c0_i32_15 : i32
    %23 = arith.extui %22 : i1 to i32
    %c0_i32_16 = arith.constant 0 : i32
    %24 = arith.cmpi ne, %23, %c0_i32_16 : i32
    scf.if %24 {
      %c1_i32 = arith.constant 1 : i32
      %170 = arith.addi %arg1, %c1_i32 : i32
      %c16_i32 = arith.constant 16 : i32
      %171 = arith.muli %170, %c16_i32 : i32
      %c1_i32_36 = arith.constant 1 : i32
      %c0_i32_37 = arith.constant 0 : i32
      %172 = tpu.memref_slice %arg3[%arg0, %171, %c0_i32_37] : memref<2x16x512xf32, #tpu.memory_space<any>> -> memref<1x1x512xf32, #tpu.memory_space<any>>
      %173 = tpu.memref_squeeze %172 : memref<1x1x512xf32, #tpu.memory_space<any>> -> memref<1x512xf32, #tpu.memory_space<any>>
      %c1_i32_38 = arith.constant 1 : i32
      %c0_i32_39 = arith.constant 0 : i32
      %174 = tpu.memref_slice %arg8[%c1_i32_38, %c0_i32_39] : memref<2x512xf32, #tpu.memory_space<vmem>> -> memref<1x512xf32, #tpu.memory_space<vmem>>
      %175 = tpu.memref_slice %arg9[%c1_i32_36] : memref<2x!tpu.dma_semaphore, #tpu.memory_space<semaphore_mem>> -> memref<1x!tpu.dma_semaphore, #tpu.memory_space<semaphore_mem>>
      %176 = tpu.memref_squeeze %175 : memref<1x!tpu.dma_semaphore, #tpu.memory_space<semaphore_mem>> -> memref<!tpu.dma_semaphore, #tpu.memory_space<semaphore_mem>>
      tpu.wait_dma2 semaphore(%176 : memref<!tpu.dma_semaphore, #tpu.memory_space<semaphore_mem>>) src(%173 : memref<1x512xf32, #tpu.memory_space<any>>) dst(%174 : memref<1x512xf32, #tpu.memory_space<vmem>>)
      %c1_40 = arith.constant 1 : index
      %c0_41 = arith.constant 0 : index
      %177 = vector.load %arg8[%c1_40, %c0_41] : memref<2x512xf32, #tpu.memory_space<vmem>>, vector<1x512xf32>
      %c17 = arith.constant 17 : index
      %c128_42 = arith.constant 128 : index
      %178 = vector.load %arg7[%c17, %c128_42] : memref<18x768xf32, #tpu.memory_space<vmem>>, vector<1x512xf32>
      tpu.vector_store %arg7[%c17, %c128_42], %177 {strides = array<i32>} : memref<18x768xf32, #tpu.memory_space<vmem>>, vector<1x512xf32>,
    } else {
    }
    %c0_17 = arith.constant 0 : index
    %c0_18 = arith.constant 0 : index
    %25 = vector.load %arg4[%c0_17, %c0_18] : memref<9x512xf32, #tpu.memory_space<vmem>>, vector<9x512xf32>
    %c0_19 = arith.constant 0 : index
    %c0_20 = arith.constant 0 : index
    %26 = vector.load %arg5[%c0_19, %c0_20] : memref<1x512xf32, #tpu.memory_space<vmem>>, vector<1x512xf32>
    %27 = vector.shape_cast %26 : vector<1x512xf32> to vector<512xf32>
    %c0_21 = arith.constant 0 : index
    %c96 = arith.constant 96 : index
    %28 = vector.load %arg7[%c0_21, %c96] : memref<18x768xf32, #tpu.memory_space<vmem>>, vector<10x512xf32>
    %c0_22 = arith.constant 0 : index
    %c128_23 = arith.constant 128 : index
    %29 = vector.load %arg7[%c0_22, %c128_23] : memref<18x768xf32, #tpu.memory_space<vmem>>, vector<10x512xf32>
    %c0_24 = arith.constant 0 : index
    %c160 = arith.constant 160 : index
    %30 = vector.load %arg7[%c0_24, %c160] : memref<18x768xf32, #tpu.memory_space<vmem>>, vector<10x512xf32>
    %31 = vector.shape_cast %27 : vector<512xf32> to vector<1x512xf32>
    %32 = vector.broadcast %31 : vector<1x512xf32> to vector<8x512xf32>
    %33 = vector.extract_strided_slice %28 {offsets = [0, 0], sizes = [8, 512], strides = [1, 1]} : vector<10x512xf32> to vector<8x512xf32>
    %34 = vector.extract_strided_slice %25 {offsets = [0, 0], sizes = [1, 512], strides = [1, 1]} : vector<9x512xf32> to vector<1x512xf32>
    %35 = vector.shape_cast %34 : vector<1x512xf32> to vector<512xf32>
    %36 = vector.shape_cast %35 : vector<512xf32> to vector<1x512xf32>
    %37 = vector.broadcast %36 : vector<1x512xf32> to vector<8x512xf32>
    %38 = arith.mulf %33, %37 : vector<8x512xf32>
    %39 = arith.addf %32, %38 : vector<8x512xf32>
    %40 = vector.extract_strided_slice %29 {offsets = [0, 0], sizes = [8, 512], strides = [1, 1]} : vector<10x512xf32> to vector<8x512xf32>
    %41 = vector.extract_strided_slice %25 {offsets = [1, 0], sizes = [1, 512], strides = [1, 1]} : vector<9x512xf32> to vector<1x512xf32>
    %42 = vector.shape_cast %41 : vector<1x512xf32> to vector<512xf32>
    %43 = vector.shape_cast %42 : vector<512xf32> to vector<1x512xf32>
    %44 = vector.broadcast %43 : vector<1x512xf32> to vector<8x512xf32>
    %45 = arith.mulf %40, %44 : vector<8x512xf32>
    %46 = arith.addf %39, %45 : vector<8x512xf32>
    %47 = vector.extract_strided_slice %30 {offsets = [0, 0], sizes = [8, 512], strides = [1, 1]} : vector<10x512xf32> to vector<8x512xf32>
    %48 = vector.extract_strided_slice %25 {offsets = [2, 0], sizes = [1, 512], strides = [1, 1]} : vector<9x512xf32> to vector<1x512xf32>
    %49 = vector.shape_cast %48 : vector<1x512xf32> to vector<512xf32>
    %50 = vector.shape_cast %49 : vector<512xf32> to vector<1x512xf32>
    %51 = vector.broadcast %50 : vector<1x512xf32> to vector<8x512xf32>
    %52 = arith.mulf %47, %51 : vector<8x512xf32>
    %53 = arith.addf %46, %52 : vector<8x512xf32>
    %54 = vector.extract_strided_slice %28 {offsets = [1, 0], sizes = [8, 512], strides = [1, 1]} : vector<10x512xf32> to vector<8x512xf32>
    %55 = vector.extract_strided_slice %25 {offsets = [3, 0], sizes = [1, 512], strides = [1, 1]} : vector<9x512xf32> to vector<1x512xf32>
    %56 = vector.shape_cast %55 : vector<1x512xf32> to vector<512xf32>
    %57 = vector.shape_cast %56 : vector<512xf32> to vector<1x512xf32>
    %58 = vector.broadcast %57 : vector<1x512xf32> to vector<8x512xf32>
    %59 = arith.mulf %54, %58 : vector<8x512xf32>
    %60 = arith.addf %53, %59 : vector<8x512xf32>
    %61 = vector.extract_strided_slice %29 {offsets = [1, 0], sizes = [8, 512], strides = [1, 1]} : vector<10x512xf32> to vector<8x512xf32>
    %62 = vector.extract_strided_slice %25 {offsets = [4, 0], sizes = [1, 512], strides = [1, 1]} : vector<9x512xf32> to vector<1x512xf32>
    %63 = vector.shape_cast %62 : vector<1x512xf32> to vector<512xf32>
    %64 = vector.shape_cast %63 : vector<512xf32> to vector<1x512xf32>
    %65 = vector.broadcast %64 : vector<1x512xf32> to vector<8x512xf32>
    %66 = arith.mulf %61, %65 : vector<8x512xf32>
    %67 = arith.addf %60, %66 : vector<8x512xf32>
    %68 = vector.extract_strided_slice %30 {offsets = [1, 0], sizes = [8, 512], strides = [1, 1]} : vector<10x512xf32> to vector<8x512xf32>
    %69 = vector.extract_strided_slice %25 {offsets = [5, 0], sizes = [1, 512], strides = [1, 1]} : vector<9x512xf32> to vector<1x512xf32>
    %70 = vector.shape_cast %69 : vector<1x512xf32> to vector<512xf32>
    %71 = vector.shape_cast %70 : vector<512xf32> to vector<1x512xf32>
    %72 = vector.broadcast %71 : vector<1x512xf32> to vector<8x512xf32>
    %73 = arith.mulf %68, %72 : vector<8x512xf32>
    %74 = arith.addf %67, %73 : vector<8x512xf32>
    %75 = vector.extract_strided_slice %28 {offsets = [2, 0], sizes = [8, 512], strides = [1, 1]} : vector<10x512xf32> to vector<8x512xf32>
    %76 = vector.extract_strided_slice %25 {offsets = [6, 0], sizes = [1, 512], strides = [1, 1]} : vector<9x512xf32> to vector<1x512xf32>
    %77 = vector.shape_cast %76 : vector<1x512xf32> to vector<512xf32>
    %78 = vector.shape_cast %77 : vector<512xf32> to vector<1x512xf32>
    %79 = vector.broadcast %78 : vector<1x512xf32> to vector<8x512xf32>
    %80 = arith.mulf %75, %79 : vector<8x512xf32>
    %81 = arith.addf %74, %80 : vector<8x512xf32>
    %82 = vector.extract_strided_slice %29 {offsets = [2, 0], sizes = [8, 512], strides = [1, 1]} : vector<10x512xf32> to vector<8x512xf32>
    %83 = vector.extract_strided_slice %25 {offsets = [7, 0], sizes = [1, 512], strides = [1, 1]} : vector<9x512xf32> to vector<1x512xf32>
    %84 = vector.shape_cast %83 : vector<1x512xf32> to vector<512xf32>
    %85 = vector.shape_cast %84 : vector<512xf32> to vector<1x512xf32>
    %86 = vector.broadcast %85 : vector<1x512xf32> to vector<8x512xf32>
    %87 = arith.mulf %82, %86 : vector<8x512xf32>
    %88 = arith.addf %81, %87 : vector<8x512xf32>
    %89 = vector.extract_strided_slice %30 {offsets = [2, 0], sizes = [8, 512], strides = [1, 1]} : vector<10x512xf32> to vector<8x512xf32>
    %90 = vector.extract_strided_slice %25 {offsets = [8, 0], sizes = [1, 512], strides = [1, 1]} : vector<9x512xf32> to vector<1x512xf32>
    %91 = vector.shape_cast %90 : vector<1x512xf32> to vector<512xf32>
    %92 = vector.shape_cast %91 : vector<512xf32> to vector<1x512xf32>
    %93 = vector.broadcast %92 : vector<1x512xf32> to vector<8x512xf32>
    %94 = arith.mulf %89, %93 : vector<8x512xf32>
    %95 = arith.addf %88, %94 : vector<8x512xf32>
    %c0_25 = arith.constant 0 : index
    %c0_26 = arith.constant 0 : index
    %c0_27 = arith.constant 0 : index
    %96 = vector.load %arg6[%c0_25, %c0_26, %c0_27] : memref<1x16x512xf32, #tpu.memory_space<vmem>>, vector<1x8x512xf32>
    %97 = vector.shape_cast %96 : vector<1x8x512xf32> to vector<8x512xf32>
    %98 = vector.shape_cast %95 : vector<8x512xf32> to vector<1x8x512xf32>
    tpu.vector_store %arg6[%c0_25, %c0_26, %c0_27], %98 {strides = array<i32>} : memref<1x16x512xf32, #tpu.memory_space<vmem>>, vector<1x8x512xf32>,
    %c8 = arith.constant 8 : index
    %c96_28 = arith.constant 96 : index
    %99 = vector.load %arg7[%c8, %c96_28] : memref<18x768xf32, #tpu.memory_space<vmem>>, vector<10x512xf32>
    %c8_29 = arith.constant 8 : index
    %c128_30 = arith.constant 128 : index
    %100 = vector.load %arg7[%c8_29, %c128_30] : memref<18x768xf32, #tpu.memory_space<vmem>>, vector<10x512xf32>
    %c8_31 = arith.constant 8 : index
    %c160_32 = arith.constant 160 : index
    %101 = vector.load %arg7[%c8_31, %c160_32] : memref<18x768xf32, #tpu.memory_space<vmem>>, vector<10x512xf32>
    %102 = vector.shape_cast %27 : vector<512xf32> to vector<1x512xf32>
    %103 = vector.broadcast %102 : vector<1x512xf32> to vector<8x512xf32>
    %104 = vector.extract_strided_slice %99 {offsets = [0, 0], sizes = [8, 512], strides = [1, 1]} : vector<10x512xf32> to vector<8x512xf32>
    %105 = vector.extract_strided_slice %25 {offsets = [0, 0], sizes = [1, 512], strides = [1, 1]} : vector<9x512xf32> to vector<1x512xf32>
    %106 = vector.shape_cast %105 : vector<1x512xf32> to vector<512xf32>
    %107 = vector.shape_cast %106 : vector<512xf32> to vector<1x512xf32>
    %108 = vector.broadcast %107 : vector<1x512xf32> to vector<8x512xf32>
    %109 = arith.mulf %104, %108 : vector<8x512xf32>
    %110 = arith.addf %103, %109 : vector<8x512xf32>
    %111 = vector.extract_strided_slice %100 {offsets = [0, 0], sizes = [8, 512], strides = [1, 1]} : vector<10x512xf32> to vector<8x512xf32>
    %112 = vector.extract_strided_slice %25 {offsets = [1, 0], sizes = [1, 512], strides = [1, 1]} : vector<9x512xf32> to vector<1x512xf32>
    %113 = vector.shape_cast %112 : vector<1x512xf32> to vector<512xf32>
    %114 = vector.shape_cast %113 : vector<512xf32> to vector<1x512xf32>
    %115 = vector.broadcast %114 : vector<1x512xf32> to vector<8x512xf32>
    %116 = arith.mulf %111, %115 : vector<8x512xf32>
    %117 = arith.addf %110, %116 : vector<8x512xf32>
    %118 = vector.extract_strided_slice %101 {offsets = [0, 0], sizes = [8, 512], strides = [1, 1]} : vector<10x512xf32> to vector<8x512xf32>
    %119 = vector.extract_strided_slice %25 {offsets = [2, 0], sizes = [1, 512], strides = [1, 1]} : vector<9x512xf32> to vector<1x512xf32>
    %120 = vector.shape_cast %119 : vector<1x512xf32> to vector<512xf32>
    %121 = vector.shape_cast %120 : vector<512xf32> to vector<1x512xf32>
    %122 = vector.broadcast %121 : vector<1x512xf32> to vector<8x512xf32>
    %123 = arith.mulf %118, %122 : vector<8x512xf32>
    %124 = arith.addf %117, %123 : vector<8x512xf32>
    %125 = vector.extract_strided_slice %99 {offsets = [1, 0], sizes = [8, 512], strides = [1, 1]} : vector<10x512xf32> to vector<8x512xf32>
    %126 = vector.extract_strided_slice %25 {offsets = [3, 0], sizes = [1, 512], strides = [1, 1]} : vector<9x512xf32> to vector<1x512xf32>
    %127 = vector.shape_cast %126 : vector<1x512xf32> to vector<512xf32>
    %128 = vector.shape_cast %127 : vector<512xf32> to vector<1x512xf32>
    %129 = vector.broadcast %128 : vector<1x512xf32> to vector<8x512xf32>
    %130 = arith.mulf %125, %129 : vector<8x512xf32>
    %131 = arith.addf %124, %130 : vector<8x512xf32>
    %132 = vector.extract_strided_slice %100 {offsets = [1, 0], sizes = [8, 512], strides = [1, 1]} : vector<10x512xf32> to vector<8x512xf32>
    %133 = vector.extract_strided_slice %25 {offsets = [4, 0], sizes = [1, 512], strides = [1, 1]} : vector<9x512xf32> to vector<1x512xf32>
    %134 = vector.shape_cast %133 : vector<1x512xf32> to vector<512xf32>
    %135 = vector.shape_cast %134 : vector<512xf32> to vector<1x512xf32>
    %136 = vector.broadcast %135 : vector<1x512xf32> to vector<8x512xf32>
    %137 = arith.mulf %132, %136 : vector<8x512xf32>
    %138 = arith.addf %131, %137 : vector<8x512xf32>
    %139 = vector.extract_strided_slice %101 {offsets = [1, 0], sizes = [8, 512], strides = [1, 1]} : vector<10x512xf32> to vector<8x512xf32>
    %140 = vector.extract_strided_slice %25 {offsets = [5, 0], sizes = [1, 512], strides = [1, 1]} : vector<9x512xf32> to vector<1x512xf32>
    %141 = vector.shape_cast %140 : vector<1x512xf32> to vector<512xf32>
    %142 = vector.shape_cast %141 : vector<512xf32> to vector<1x512xf32>
    %143 = vector.broadcast %142 : vector<1x512xf32> to vector<8x512xf32>
    %144 = arith.mulf %139, %143 : vector<8x512xf32>
    %145 = arith.addf %138, %144 : vector<8x512xf32>
    %146 = vector.extract_strided_slice %99 {offsets = [2, 0], sizes = [8, 512], strides = [1, 1]} : vector<10x512xf32> to vector<8x512xf32>
    %147 = vector.extract_strided_slice %25 {offsets = [6, 0], sizes = [1, 512], strides = [1, 1]} : vector<9x512xf32> to vector<1x512xf32>
    %148 = vector.shape_cast %147 : vector<1x512xf32> to vector<512xf32>
    %149 = vector.shape_cast %148 : vector<512xf32> to vector<1x512xf32>
    %150 = vector.broadcast %149 : vector<1x512xf32> to vector<8x512xf32>
    %151 = arith.mulf %146, %150 : vector<8x512xf32>
    %152 = arith.addf %145, %151 : vector<8x512xf32>
    %153 = vector.extract_strided_slice %100 {offsets = [2, 0], sizes = [8, 512], strides = [1, 1]} : vector<10x512xf32> to vector<8x512xf32>
    %154 = vector.extract_strided_slice %25 {offsets = [7, 0], sizes = [1, 512], strides = [1, 1]} : vector<9x512xf32> to vector<1x512xf32>
    %155 = vector.shape_cast %154 : vector<1x512xf32> to vector<512xf32>
    %156 = vector.shape_cast %155 : vector<512xf32> to vector<1x512xf32>
    %157 = vector.broadcast %156 : vector<1x512xf32> to vector<8x512xf32>
    %158 = arith.mulf %153, %157 : vector<8x512xf32>
    %159 = arith.addf %152, %158 : vector<8x512xf32>
    %160 = vector.extract_strided_slice %101 {offsets = [2, 0], sizes = [8, 512], strides = [1, 1]} : vector<10x512xf32> to vector<8x512xf32>
    %161 = vector.extract_strided_slice %25 {offsets = [8, 0], sizes = [1, 512], strides = [1, 1]} : vector<9x512xf32> to vector<1x512xf32>
    %162 = vector.shape_cast %161 : vector<1x512xf32> to vector<512xf32>
    %163 = vector.shape_cast %162 : vector<512xf32> to vector<1x512xf32>
    %164 = vector.broadcast %163 : vector<1x512xf32> to vector<8x512xf32>
    %165 = arith.mulf %160, %164 : vector<8x512xf32>
    %166 = arith.addf %159, %165 : vector<8x512xf32>
    %c0_33 = arith.constant 0 : index
    %c8_34 = arith.constant 8 : index
    %c0_35 = arith.constant 0 : index
    %167 = vector.load %arg6[%c0_33, %c8_34, %c0_35] : memref<1x16x512xf32, #tpu.memory_space<vmem>>, vector<1x8x512xf32>
    %168 = vector.shape_cast %167 : vector<1x8x512xf32> to vector<8x512xf32>
    %169 = vector.shape_cast %166 : vector<8x512xf32> to vector<1x8x512xf32>
    tpu.vector_store %arg6[%c0_33, %c8_34, %c0_35], %169 {strides = array<i32>} : memref<1x16x512xf32, #tpu.memory_space<vmem>>, vector<1x8x512xf32>,
    return
  }
  func.func @transform_0(%arg0: i32, %arg1: i32) -> (i32, i32, i32) {
    %c0_i32 = arith.constant 0 : i32
    %c0_i32_0 = arith.constant 0 : i32
    return %arg0, %arg1, %c0_i32 : i32, i32, i32
  }
  func.func @transform_2(%arg0: i32, %arg1: i32) -> (i32, i32) {
    %c0_i32 = arith.constant 0 : i32
    %c0_i32_0 = arith.constant 0 : i32
    %c0_i32_1 = arith.constant 0 : i32
    return %c0_i32, %c0_i32_0 : i32, i32
  }
  func.func @transform_3(%arg0: i32, %arg1: i32) -> (i32, i32) {
    %c0_i32 = arith.constant 0 : i32
    %c0_i32_0 = arith.constant 0 : i32
    %c0_i32_1 = arith.constant 0 : i32
    return %c0_i32, %c0_i32_0 : i32, i32
  }
  func.func @transform_4(%arg0: i32, %arg1: i32) -> (i32, i32, i32) {
    %c0_i32 = arith.constant 0 : i32
    %c0_i32_0 = arith.constant 0 : i32
    return %arg0, %arg1, %c0_i32 : i32, i32, i32
  }
}

</mosaic_0001>

<llo_original>
// kernel: tpu_custom_call.1
$region0: #{tpu_custom_call.1}
  #allocation0 [shape = 'u32[]', space=smem, size = 0x4, offset = 0x4, fixed_abs, tag = 'smem constant byte address 0x4 - core index']
  #allocation1 [shape = 'u32[72,128]{1,0:T(1,128)}', space=vmem, size = 0x9000, scoped, tag = 'internal scratch']
  #allocation2 [shape = 'f32[18,768]{1,0:T(8,128)}', space=vmem, size = 0x12000, scoped, tag = 'scratch operand']
  #allocation3 [shape = 'f32[2,512]{1,0:T(2,128)}', space=vmem, size = 0x1000, scoped, tag = 'scratch operand']
  #allocation4 [shape = 's32[2]{0}', space=sflag, size = 0x8, scoped, tag = 'scratch operand']
  #allocation12 [shape = 's32[]', space=sflag, size = 0x4, offset = 0, fixed_abs, tag = 'sflag constant byte address 0x0 - dummy sync flag']
  #allocation13 [shape = 's32[]', space=sflag, size = 0x4, offset = 0, fixed_abs, tag = 'sflag constant byte address 0x0 - dummy sync flag']
  %s0 = inlined_call_operand.hbm [shape: f32[2,16,512], index: 0, kind: input, shape index: {}]
  %s1 = inlined_call_operand.hbm [shape: f32[2,16,512], index: 1, kind: input, shape index: {}]
  %s2 = inlined_call_operand.hbm [shape: f32[9,512], index: 2, kind: input, shape index: {}]
  %s3 = inlined_call_operand.hbm [shape: f32[1,512], index: 3, kind: input, shape index: {}]
  %s4 = inlined_call_operand.hbm [shape: f32[2,16,512], index: 4, kind: output, shape index: {}]
  %s5 = sld [smem:[#allocation0]]
  $region81: #{tpu_custom_call.1} parent=0
    _
  %s7 = ssub.s32 1, %s5
  %s8 = scalar_select 0, %s7, %s5
  $region1: #{tpu_custom_call.1} parent=0
    #allocation5 [shape = 'u8[65536]{0}', space=vmem, size = 0x10000, scoped, tag = 'input window, operand 0']
    #allocation6 [shape = 's32[2]{0}', space=sflag, size = 0x8, scoped, tag = 'scoped memory for tpu_custom_call.1']
    #allocation7 [shape = 's32[2]{0}', space=sflag, size = 0x8, scoped, tag = 'scoped memory for tpu_custom_call.1']
    #allocation8 [shape = 'u8[32768]{0}', space=vmem, size = 0x8000, scoped, tag = 'input window, operand 2, single buffered']
    #allocation9 [shape = 's32[1]{0}', space=sflag, size = 0x4, scoped, tag = 'scoped memory for tpu_custom_call.1']
    #allocation10 [shape = 'u8[2048]{0}', space=vmem, size = 0x800, scoped, tag = 'input window, operand 3, single buffered']
    #allocation11 [shape = 'u8[65536]{0}', space=vmem, size = 0x10000, scoped, tag = 'output window, operand 0']
    %9 = vsyncpa [#allocation6], 0
    %s10 = scalar_lea.sflag [#allocation6], 1
    %11 = vsyncpa %s10, 0
    %12 = vsyncpa [#allocation9], 0
    %13 = vsyncpa [#allocation7], 0
    %s14 = scalar_lea.sflag [#allocation7], 1
    %15 = vsyncpa %s14, 0
    loop: start=0, step=1, limit=4
    $region2: #{tpu_custom_call.1} parent=1 // loop_pre_header
      _
    $region3: #{tpu_custom_call.1} parent=1 // loop_header
      %s17 = sphi 0, %s21
      %p18 = scmp.ge.s32.totalorder %s17, 4
      %s24 = sphi 0, %s36
      %s25 = sphi 0, %s32
      %s26 = sphi 0, %s24
      %s27 = sphi 0, %s25
      %s28 = sphi 0, %s26
      %s29 = sphi 0, %s27
      %s41 = sphi 0, %s43
      %s44 = sphi 0, %s41
      %s45 = sphi 0, %s44
      %s61 = sphi 0, %s45
      %s65 = sphi 0, %s65
      %s67 = sphi 0, %s65
      %s68 = sphi 0, %s67
      %s82 = sphi 0, %s68
      %s86 = sphi 0, %s86
      %s88 = sphi 0, %s86
      %s89 = sphi 0, %s88
      %s103 = sphi 0, %s89
      %s111 = sphi 0, %s113
      %s114 = sphi 0, %s111
      %s115 = sphi 0, %s114
      %s131 = sphi 0, %s115
    $region4: #{tpu_custom_call.1} parent=1 // loop_header_branch
      %20 = sbr.rel (%p18) target = $region8
    $region5: #{tpu_custom_call.1} parent=1 // loop_body
      %s22 = ssub.s32 %s17, 1
      %s23 = ssub.s32 %s17, 2
      %s30 = sadd.s32 1, %s25
      %p31 = scmp.ge.s32.totalorder %s30, 1
      %s32 = scalar_select %p31, 0, %s30
      %s33 = sadd.s32 1, %s24
      %s34 = scalar_select %p31, %s33, %s24
      %p35 = scmp.ge.s32.totalorder %s34, 2
      %s36 = scalar_select %p35, 0, %s34
      %s37 = ssub.s32 %s24, %s36
      %s38 = ssub.s32 %s25, %s32
      %s39 = sor.u32 %s37, %s38
      %p40 = scmp.eq.s32.totalorder %s39, 0
      %s42 = sadd.s32 %s41, 1
      %s43 = scalar_select %p40, %s41, %s42
      %p46 = pneg %p40
      %p47 = scmp.eq.s32.totalorder %s17, 1
      %p48 = por %p46, %p47
      %p49 = scmp.ne.s32.totalorder %s41, %s44
      %p50 = scmp.eq.s32.totalorder %s17, 0
      %p51 = por %p49, %p50
      %p52 = scmp.ne.s32.totalorder %s41, %s44
      %p53 = scmp.eq.s32.totalorder %s22, 1
      %p54 = por %p52, %p53
      %p55 = scmp.ne.s32.totalorder %s44, %s45
      %p56 = scmp.eq.s32.totalorder %s22, 0
      %p57 = por %p55, %p56
      %p58 = scmp.ne.s32.totalorder %s44, %s45
      %p59 = scmp.eq.s32.totalorder %s23, 1
      %p60 = por %p58, %p59
      %p62 = scmp.ne.s32.totalorder %s45, %s61
      %p63 = scmp.eq.s32.totalorder %s23, 0
      %p64 = por %p62, %p63
      %s66 = sadd.s32 %s65, 1
      %p69 = scmp.eq.s32.totalorder %s17, 1
      %p70 = scmp.ne.s32.totalorder %s65, %s67
      %p71 = scmp.eq.s32.totalorder %s17, 0
      %p72 = por %p70, %p71
      %p73 = scmp.ne.s32.totalorder %s65, %s67
      %p74 = scmp.eq.s32.totalorder %s22, 1
      %p75 = por %p73, %p74
      %p76 = scmp.ne.s32.totalorder %s67, %s68
      %p77 = scmp.eq.s32.totalorder %s22, 0
      %p78 = por %p76, %p77
      %p79 = scmp.ne.s32.totalorder %s67, %s68
      %p80 = scmp.eq.s32.totalorder %s23, 1
      %p81 = por %p79, %p80
      %p83 = scmp.ne.s32.totalorder %s68, %s82
      %p84 = scmp.eq.s32.totalorder %s23, 0
      %p85 = por %p83, %p84
      %s87 = sadd.s32 %s86, 1
      %p90 = scmp.eq.s32.totalorder %s17, 1
      %p91 = scmp.ne.s32.totalorder %s86, %s88
      %p92 = scmp.eq.s32.totalorder %s17, 0
      %p93 = por %p91, %p92
      %p94 = scmp.ne.s32.totalorder %s86, %s88
      %p95 = scmp.eq.s32.totalorder %s22, 1
      %p96 = por %p94, %p95
      %p97 = scmp.ne.s32.totalorder %s88, %s89
      %p98 = scmp.eq.s32.totalorder %s22, 0
      %p99 = por %p97, %p98
      %p100 = scmp.ne.s32.totalorder %s88, %s89
      %p101 = scmp.eq.s32.totalorder %s23, 1
      %p102 = por %p100, %p101
      %p104 = scmp.ne.s32.totalorder %s89, %s103
      %p105 = scmp.eq.s32.totalorder %s23, 0
      %p106 = por %p104, %p105
      %s107 = ssub.s32 %s24, %s36
      %s108 = ssub.s32 %s25, %s32
      %s109 = sor.u32 %s107, %s108
      %p110 = scmp.eq.s32.totalorder %s109, 0
      %s112 = sadd.s32 %s111, 1
      %s113 = scalar_select %p110, %s111, %s112
      %p116 = pneg %p110
      %p117 = scmp.eq.s32.totalorder %s17, 1
      %p118 = por %p116, %p117
      %p119 = scmp.ne.s32.totalorder %s111, %s114
      %p120 = scmp.eq.s32.totalorder %s17, 0
      %p121 = por %p119, %p120
      %p122 = scmp.ne.s32.totalorder %s111, %s114
      %p123 = scmp.eq.s32.totalorder %s22, 1
      %p124 = por %p122, %p123
      %p125 = scmp.ne.s32.totalorder %s114, %s115
      %p126 = scmp.eq.s32.totalorder %s22, 0
      %p127 = por %p125, %p126
      %p128 = scmp.ne.s32.totalorder %s114, %s115
      %p129 = scmp.eq.s32.totalorder %s23, 1
      %p130 = por %p128, %p129
      %p132 = scmp.ne.s32.totalorder %s115, %s131
      %p133 = scmp.eq.s32.totalorder %s23, 0
      %p134 = por %p132, %p133
      %p135 = scmp.le.s32.totalorder 1, %s17
      %p136 = scmp.lt.s32.totalorder %s17, 3
      %p137 = pnand %p135, %p136
      %p138 = pneg %p137
      // Predicated region
      $region9: #{tpu_custom_call.1} parent=5 // pred_check
        _
      $region10: #{tpu_custom_call.1} parent=5 // pred_check_branch
        %140 = sbr.rel (%p137) target = $region12
      $region11: #{tpu_custom_call.1} parent=5 // pred_region
        %s141 = ssub.s32 %s17, 1
        // Predicated region
        $region13: #{tpu_custom_call.1} parent=11 // pred_check
          %p142 = pneg %p78
        $region14: #{tpu_custom_call.1} parent=11 // pred_check_branch
          %144 = sbr.rel (%p142) target = $region16
        $region15: #{tpu_custom_call.1} parent=11 // pred_region
          %146 = vsyncadd [#allocation9], 0
          %s147 = sshll.u32 %s2, 4
          %s148 = int_to_ptr.hbm [resolvable:$true] %s147
          %s149 = sshll.u32 [#allocation8], 4
          %s150 = int_to_ptr.vmem [resolvable:$true] %s149
          %155 = dma.hbm_to_vmem [thread:$0]  %s148, 1024, %s150, [#allocation9], 512, 512, 32
        $region16: #{tpu_custom_call.1} parent=11 // pred_fallthru
          _
        // Predicated region
        $region17: #{tpu_custom_call.1} parent=11 // pred_check
          %p156 = pneg %p99
        $region18: #{tpu_custom_call.1} parent=11 // pred_check_branch
          %158 = sbr.rel (%p156) target = $region20
        $region19: #{tpu_custom_call.1} parent=11 // pred_region
          %160 = vsyncadd [#allocation9], 0
          %s162 = sshll.u32 %s3, 4
          %s163 = int_to_ptr.hbm [resolvable:$true] %s162
          %s164 = sshll.u32 [#allocation10], 4
          %s165 = int_to_ptr.vmem [resolvable:$true] %s164
          %167 = dma.hbm_to_vmem [thread:$0]  %s163, 64, %s165, [#allocation9]
        $region20: #{tpu_custom_call.1} parent=11 // pred_fallthru
          _
      $region12: #{tpu_custom_call.1} parent=5 // pred_fallthru
        _
      %p168 = scmp.lt.s32.totalorder %s17, 2
      // Predicated region
      $region21: #{tpu_custom_call.1} parent=5 // pred_check
        %p169 = pneg %p168
      $region22: #{tpu_custom_call.1} parent=5 // pred_check_branch
        %171 = sbr.rel (%p169) target = $region24
      $region23: #{tpu_custom_call.1} parent=5 // pred_region
        // Predicated region
        $region25: #{tpu_custom_call.1} parent=23 // pred_check
          %p172 = pneg %p51
        $region26: #{tpu_custom_call.1} parent=23 // pred_check_branch
          %174 = sbr.rel (%p172) target = $region28
        $region27: #{tpu_custom_call.1} parent=23 // pred_region
          %s175 = sand.u32 %s41, 1
          %s176 = scalar_lea.sflag [#allocation6], %s175
          %s177 = sand.u32 %s41, 1
          %s178 = smul.addr %s177, 64
          %s179 = scalar_lea.vmem [#allocation5], %s178
          %s180 = smul.u32 2, %s25
          %182 = vsyncadd %s176, 0
          %s183 = smul.addr %s180, 4
          %s184 = smul.addr %s24, 8
          %s185 = sadd.s32 %s183, %s184
          %s186 = smul.addr %s185, 8
          %s187 = scalar_lea.hbm %s0, %s186
          %s188 = sshll.u32 %s187, 4
          %s189 = int_to_ptr.hbm [resolvable:$true] %s188
          %s190 = sshll.u32 %s179, 4
          %s191 = int_to_ptr.vmem [resolvable:$true] %s190
          %196 = dma.hbm_to_vmem [thread:$0]  %s189, 1024, %s191, %s176, 512, 512, 32
        $region28: #{tpu_custom_call.1} parent=23 // pred_fallthru
          _
      $region24: #{tpu_custom_call.1} parent=5 // pred_fallthru
        _
      %p197 = scmp.le.s32.totalorder 1, %s17
      %p198 = scmp.lt.s32.totalorder %s17, 3
      %p199 = pnand %p197, %p198
      %p200 = pneg %p199
      // Predicated region
      $region29: #{tpu_custom_call.1} parent=5 // pred_check
        _
      $region30: #{tpu_custom_call.1} parent=5 // pred_check_branch
        %202 = sbr.rel (%p199) target = $region32
      $region31: #{tpu_custom_call.1} parent=5 // pred_region
        %s203 = ssub.s32 %s17, 1
        %s204 = sand.u32 %s44, 1
        %s205 = scalar_lea.sflag [#allocation6], %s204
        %s206 = sand.u32 %s44, 1
        %s207 = smul.addr %s206, 64
        %s208 = scalar_lea.vmem [#allocation5], %s207
        // Predicated region
        $region33: #{tpu_custom_call.1} parent=31 // pred_check
          %p209 = pneg %p57
        $region34: #{tpu_custom_call.1} parent=31 // pred_check_branch
          %211 = sbr.rel (%p209) target = $region36
        $region35: #{tpu_custom_call.1} parent=31 // pred_region
          %213 = dma.done %s205, 1024
        $region36: #{tpu_custom_call.1} parent=31 // pred_fallthru
          _
        // Predicated region
        $region37: #{tpu_custom_call.1} parent=31 // pred_check
          %p214 = pneg %p78
        $region38: #{tpu_custom_call.1} parent=31 // pred_check_branch
          %216 = sbr.rel (%p214) target = $region40
        $region39: #{tpu_custom_call.1} parent=31 // pred_region
          %218 = dma.done [#allocation9], 1024
        $region40: #{tpu_custom_call.1} parent=31 // pred_fallthru
          _
        // Predicated region
        $region41: #{tpu_custom_call.1} parent=31 // pred_check
          %p219 = pneg %p99
        $region42: #{tpu_custom_call.1} parent=31 // pred_check_branch
          %221 = sbr.rel (%p219) target = $region44
        $region43: #{tpu_custom_call.1} parent=31 // pred_region
          %223 = dma.done [#allocation9], 64
        $region44: #{tpu_custom_call.1} parent=31 // pred_fallthru
          _
        %s224 = sand.u32 %s44, 1
        %s225 = scalar_lea.sflag [#allocation6], %s224
        %s226 = sand.u32 %s44, 1
        %s227 = smul.addr %s226, 64
        %s228 = scalar_lea.vmem [#allocation5], %s227
        %p229 = pneg %p57
        %p230 = pneg %p54
        %p231 = pneg %p78
        %p232 = pneg %p75
        %p233 = pneg %p99
        %p234 = pneg %p96
        %p235 = pneg %p127
        %p236 = pneg %p124
        %s237 = sand.u32 %s114, 1
        %s238 = scalar_lea.sflag [#allocation7], %s237
        %s239 = sand.u32 %s114, 1
        %s240 = smul.addr %s239, 64
        %s241 = scalar_lea.vmem [#allocation11], %s240
        %s242 = smul.u32 2, %s27
        %s243 = smul.u32 2, %s27
        %p244 = scmp.gt.s32.totalorder %s27, 0
        // Predicated region
        $region45: #{tpu_custom_call.1} parent=31 // pred_check
          %p245 = pneg %p244
        $region46: #{tpu_custom_call.1} parent=31 // pred_check_branch
          %247 = sbr.rel (%p245) target = $region48
        $region47: #{tpu_custom_call.1} parent=31 // pred_region
          %s248 = smul.u32 %s27, 16
          %s249 = ssub.s32 %s248, 1
          %s250 = sshrl.u32 %s249, 3
          %s251 = sand.u32 %s249, 7
          %s252 = smul.u32 %s250, 32
          %s253 = sadd.s32 %s251, %s252
          %s254 = smul.u32 %s26, 64
          %s255 = sadd.s32 %s253, %s254
          %s256 = scalar_lea.hbm %s1, %s255
          %s257 = sshll.u32 %s256, 4
          %s258 = int_to_ptr.hbm [resolvable:$true] %s257
          %s259 = sshll.u32 [#allocation3], 4
          %s260 = int_to_ptr.vmem [resolvable:$true] %s259
          %264 = dma.hbm_to_vmem [thread:$0]  %s258, 64, %s260, [#allocation4], 128, 32, 1
        $region48: #{tpu_custom_call.1} parent=31 // pred_fallthru
          _
        %p265 = scmp.lt.s32.totalorder %s27, 0
        // Predicated region
        $region49: #{tpu_custom_call.1} parent=31 // pred_check
          %p266 = pneg %p265
        $region50: #{tpu_custom_call.1} parent=31 // pred_check_branch
          %268 = sbr.rel (%p266) target = $region52
        $region51: #{tpu_custom_call.1} parent=31 // pred_region
          %s269 = sadd.s32 %s27, 1
          %s270 = smul.u32 %s269, 16
          %s271 = sshrl.u32 %s270, 3
          %s272 = sand.u32 %s270, 7
          %s273 = smul.u32 %s271, 32
          %s274 = sadd.s32 %s272, %s273
          %s275 = smul.u32 %s26, 64
          %s276 = sadd.s32 %s274, %s275
          %s277 = scalar_lea.hbm %s1, %s276
          %s278 = scalar_lea.vmem [#allocation3], 1
          %s279 = scalar_lea.sflag [#allocation4], 1
          %s280 = sshll.u32 %s277, 4
          %s281 = int_to_ptr.hbm [resolvable:$true] %s280
          %s282 = sshll.u32 %s278, 4
          %s283 = int_to_ptr.vmem [resolvable:$true] %s282
          %287 = dma.hbm_to_vmem [thread:$0]  %s281, 64, %s283, %s279, 128, 32, 1
        $region52: #{tpu_custom_call.1} parent=31 // pred_fallthru
          _
        %288 = vst [vmem:[#allocation2] sm:$0xff] 0.0
        %289 = vst [vmem:[#allocation2 + $0x30] sm:$0xff] 0.0
        %290 = vst [vmem:[#allocation2 + $0x60] sm:$0x3] 0.0
        %291 = vst [vmem:[#allocation2 + $0x28] sm:$0xff] 0.0
        %292 = vst [vmem:[#allocation2 + $0x58] sm:$0xff] 0.0
        %293 = vst [vmem:[#allocation2 + $0x88] sm:$0x3] 0.0
        %v294 = vld [vmem:[%s208] sm:$0xff]
        %v295 = vld [vmem:[%s208 + $0x8] sm:$0xff]
        %v296 = vld [vmem:[%s208 + $0x10] sm:$0xff]
        %v297 = vld [vmem:[%s208 + $0x18] sm:$0xff]
        %v298 = vld [vmem:[%s208 + $0x20] sm:$0xff]
        %v299 = vld [vmem:[%s208 + $0x28] sm:$0xff]
        %v300 = vld [vmem:[%s208 + $0x30] sm:$0xff]
        %v301 = vld [vmem:[%s208 + $0x38] sm:$0xff]
        %vm310 = vcmask 1040384
        %v311 = vrot.slane %v294, 7
        %v312 = vrot.slane %v295, 7
        %v313 = vrot.slane %v296, 7
        %v314 = vrot.slane %v297, 7
        %v315 = vrot.slane %v298, 7
        %v316 = vsel %vm310, %v311, %v315
        %v317 = vrot.slane %v299, 7
        %v318 = vsel %vm310, %v312, %v317
        %v319 = vrot.slane %v300, 7
        %v320 = vsel %vm310, %v313, %v319
        %v321 = vrot.slane %v301, 7
        %v322 = vsel %vm310, %v314, %v321
        %335 = vst [vmem:[#allocation2 + $0x8] sm:$0xfe] %v311
        %336 = vst [vmem:[#allocation2 + $0x10] sm:$0xfe] %v312
        %337 = vst [vmem:[#allocation2 + $0x18] sm:$0xfe] %v313
        %338 = vst [vmem:[#allocation2 + $0x20] sm:$0xfe] %v314
        %339 = vst [vmem:[#allocation2 + $0x38] sm:$0xff] %v316
        %340 = vst [vmem:[#allocation2 + $0x40] sm:$0xff] %v318
        %341 = vst [vmem:[#allocation2 + $0x48] sm:$0xff] %v320
        %342 = vst [vmem:[#allocation2 + $0x50] sm:$0xff] %v322
        %343 = vst [vmem:[#allocation2 + $0x68] sm:$0x1] %v315
        %344 = vst [vmem:[#allocation2 + $0x70] sm:$0x1] %v317
        %345 = vst [vmem:[#allocation2 + $0x78] sm:$0x1] %v319
        %346 = vst [vmem:[#allocation2 + $0x80] sm:$0x1] %v321
        %p347 = scmp.eq.s32.totalorder %s27, 0
        // Predicated region
        $region53: #{tpu_custom_call.1} parent=31 // pred_check
          %p348 = pneg %p347
        $region54: #{tpu_custom_call.1} parent=31 // pred_check_branch
          %350 = sbr.rel (%p348) target = $region56
        $region55: #{tpu_custom_call.1} parent=31 // pred_region
          %v351 = vlaneseq
          %vm352 = vcmp.ge.s32.totalorder %v351, 0
          %vm353 = vcmp.lt.s32.totalorder %v351, 512
          %vm354 = vmand %vm352, %vm353
          %s355 = scalar_lea.vmem [#allocation2], 8
          %356 = vst.msk [vmem:[%s355] ss:$8 sm:$0xf] %vm354, 0.0
          %357 = vst.msk [vmem:[%s355] ss:$8 sm:$0x0] %vm354, 0.0
        $region56: #{tpu_custom_call.1} parent=31 // pred_fallthru
          _
        // Predicated region
        $region57: #{tpu_custom_call.1} parent=31 // pred_check
          %p358 = pneg %p244
        $region58: #{tpu_custom_call.1} parent=31 // pred_check_branch
          %360 = sbr.rel (%p358) target = $region60
        $region59: #{tpu_custom_call.1} parent=31 // pred_region
          %s361 = smul.u32 1, 4
          %s362 = sshll.u32 %s361, 4
          %363 = dma.done [#allocation4], %s362
          %v364 = vld [vmem:[#allocation3] ss:$2 sm:$0xf]
          %v365 = vlaneseq
          %vm366 = vcmp.ge.s32.totalorder %v365, 0
          %vm367 = vcmp.lt.s32.totalorder %v365, 512
          %vm368 = vmand %vm366, %vm367
          %s369 = scalar_lea.vmem [#allocation2], 8
          %370 = vst.msk [vmem:[%s369] ss:$8 sm:$0xf] %vm368, %v364
          %371 = vst.msk [vmem:[%s369] ss:$8 sm:$0x0] %vm368, %v364
        $region60: #{tpu_custom_call.1} parent=31 // pred_fallthru
          _
        // Predicated region
        $region61: #{tpu_custom_call.1} parent=31 // pred_check
          %p372 = pneg %p347
        $region62: #{tpu_custom_call.1} parent=31 // pred_check_branch
          %374 = sbr.rel (%p372) target = $region64
        $region63: #{tpu_custom_call.1} parent=31 // pred_region
          %v375 = vlaneseq
          %vm376 = vcmp.ge.s32.totalorder %v375, 0
          %vm377 = vcmp.lt.s32.totalorder %v375, 512
          %vm378 = vmand %vm376, %vm377
          %s379 = scalar_lea.vmem [#allocation2], 105
          %380 = vst.msk [vmem:[%s379] ss:$8 sm:$0xf] %vm378, 0.0
          %381 = vst.msk [vmem:[%s379] ss:$8 sm:$0x0] %vm378, 0.0
        $region64: #{tpu_custom_call.1} parent=31 // pred_fallthru
          _
        // Predicated region
        $region65: #{tpu_custom_call.1} parent=31 // pred_check
          %p382 = pneg %p265
        $region66: #{tpu_custom_call.1} parent=31 // pred_check_branch
          %384 = sbr.rel (%p382) target = $region68
        $region67: #{tpu_custom_call.1} parent=31 // pred_region
          %s385 = scalar_lea.sflag [#allocation4], 1
          %s386 = smul.u32 1, 4
          %s387 = sshll.u32 %s386, 4
          %388 = dma.done %s385, %s387
          %s389 = scalar_lea.vmem [#allocation3], 1
          %v390 = vld [vmem:[%s389] ss:$2 sm:$0xf]
          %v391 = vlaneseq
          %vm392 = vcmp.ge.s32.totalorder %v391, 0
          %vm393 = vcmp.lt.s32.totalorder %v391, 512
          %vm394 = vmand %vm392, %vm393
          %s395 = scalar_lea.vmem [#allocation2], 105
          %396 = vst.msk [vmem:[%s395] ss:$8 sm:$0xf] %vm394, %v390
          %397 = vst.msk [vmem:[%s395] ss:$8 sm:$0x0] %vm394, %v390
        $region68: #{tpu_custom_call.1} parent=31 // pred_fallthru
          _
        %v398 = vld [vmem:[#allocation8] sm:$0xff]
        %v399 = vld [vmem:[#allocation8 + $0x8] sm:$0xff]
        %v400 = vld [vmem:[#allocation8 + $0x10] sm:$0xff]
        %v401 = vld [vmem:[#allocation8 + $0x18] sm:$0xff]
        %v402 = vld [vmem:[#allocation8 + $0x20] sm:$0x1]
        %v403 = vld [vmem:[#allocation8 + $0x28] sm:$0x1]
        %v404 = vld [vmem:[#allocation8 + $0x30] sm:$0x1]
        %v405 = vld [vmem:[#allocation8 + $0x38] sm:$0x1]
        %v406 = vld [vmem:[#allocation10] sm:$0xf]
        %v407 = vld [vmem:[#allocation2] sm:$0xff]
        %v408 = vld [vmem:[#allocation2 + $0x8] sm:$0xff]
        %v409 = vld [vmem:[#allocation2 + $0x10] sm:$0xff]
        %v410 = vld [vmem:[#allocation2 + $0x18] sm:$0xff]
        %v411 = vld [vmem:[#allocation2 + $0x20] sm:$0xff]
        %v412 = vld [vmem:[#allocation2 + $0x30] sm:$0x3]
        %v413 = vld [vmem:[#allocation2 + $0x38] sm:$0x3]
        %v414 = vld [vmem:[#allocation2 + $0x40] sm:$0x3]
        %v415 = vld [vmem:[#allocation2 + $0x48] sm:$0x3]
        %v416 = vld [vmem:[#allocation2 + $0x50] sm:$0x3]
        %v417 = vld [vmem:[#allocation2 + $0x28] sm:$0xff]
        %v418 = vld [vmem:[#allocation2 + $0x58] sm:$0x3]
        %v420 = vperm.slane %v406, 0
        %v421 = vperm.slane %v406, 1
        %v422 = vperm.slane %v406, 2
        %v423 = vperm.slane %v406, 3
        %v428 = vperm.slane %v398, 0
        %v429 = vperm.slane %v399, 0
        %v430 = vperm.slane %v400, 0
        %v431 = vperm.slane %v401, 0
        %436 = vrot.lane.b32.xlu0 %v428, 96
        %v437 = vpop.permute.xlu0 %436
        %438 = vrot.lane.b32.xlu0 %v429, 96
        %v439 = vpop.permute.xlu0 %438
        %440 = vrot.lane.b32.xlu0 %v430, 96
        %v441 = vpop.permute.xlu0 %440
        %442 = vrot.lane.b32.xlu0 %v431, 96
        %v443 = vpop.permute.xlu0 %442
        %vm444 = vcmask 785408
        %v445 = vsel %vm444, %v437, %v439
        %v446 = vsel %vm444, %v439, %v441
        %v447 = vsel %vm444, %v441, %v443
        %v453 = vmul.f32 %v407, %v437
        %v454 = vmul.f32 %v408, %v445
        %v455 = vmul.f32 %v409, %v446
        %v456 = vmul.f32 %v410, %v447
        %v457 = vmul.f32 %v411, %v443
        %463 = vrot.lane.b32.xlu0 %v453, 32
        %v464 = vpop.permute.xlu0 %463
        %465 = vrot.lane.b32.xlu0 %v454, 32
        %v466 = vpop.permute.xlu0 %465
        %467 = vrot.lane.b32.xlu0 %v455, 32
        %v468 = vpop.permute.xlu0 %467
        %469 = vrot.lane.b32.xlu0 %v456, 32
        %v470 = vpop.permute.xlu0 %469
        %471 = vrot.lane.b32.xlu0 %v457, 32
        %v472 = vpop.permute.xlu0 %471
        %vm473 = vcmask 261120
        %v474 = vsel %vm473, %v464, %v466
        %v475 = vsel %vm473, %v466, %v468
        %v476 = vsel %vm473, %v468, %v470
        %v477 = vsel %vm473, %v470, %v472
        %v482 = vadd.f32 %v420, %v474
        %v483 = vadd.f32 %v421, %v475
        %v484 = vadd.f32 %v422, %v476
        %v485 = vadd.f32 %v423, %v477
        %v486 = vperm.slane %v398, 1
        %v487 = vperm.slane %v399, 1
        %v488 = vperm.slane %v400, 1
        %v489 = vperm.slane %v401, 1
        %v490 = vmul.f32 %v408, %v486
        %v491 = vmul.f32 %v409, %v487
        %v492 = vmul.f32 %v410, %v488
        %v493 = vmul.f32 %v411, %v489
        %v494 = vadd.f32 %v482, %v490
        %v495 = vadd.f32 %v483, %v491
        %v496 = vadd.f32 %v484, %v492
        %v497 = vadd.f32 %v485, %v493
        %v498 = vperm.slane %v398, 2
        %v499 = vperm.slane %v399, 2
        %v500 = vperm.slane %v400, 2
        %v501 = vperm.slane %v401, 2
        %506 = vrot.lane.b32.xlu0 %v498, 32
        %v507 = vpop.permute.xlu0 %506
        %508 = vrot.lane.b32.xlu0 %v499, 32
        %v509 = vpop.permute.xlu0 %508
        %510 = vrot.lane.b32.xlu0 %v500, 32
        %v511 = vpop.permute.xlu0 %510
        %512 = vrot.lane.b32.xlu0 %v501, 32
        %v513 = vpop.permute.xlu0 %512
        %v514 = vsel %vm473, %v507, %v509
        %v515 = vsel %vm473, %v509, %v511
        %v516 = vsel %vm473, %v511, %v513
        %v522 = vmul.f32 %v408, %v507
        %v523 = vmul.f32 %v409, %v514
        %v524 = vmul.f32 %v410, %v515
        %v525 = vmul.f32 %v411, %v516
        %v526 = vmul.f32 %v417, %v513
        %532 = vrot.lane.b32.xlu0 %v522, 96
        %v533 = vpop.permute.xlu0 %532
        %534 = vrot.lane.b32.xlu0 %v523, 96
        %v535 = vpop.permute.xlu0 %534
        %536 = vrot.lane.b32.xlu0 %v524, 96
        %v537 = vpop.permute.xlu0 %536
        %538 = vrot.lane.b32.xlu0 %v525, 96
        %v539 = vpop.permute.xlu0 %538
        %540 = vrot.lane.b32.xlu0 %v526, 96
        %v541 = vpop.permute.xlu0 %540
        %v542 = vsel %vm444, %v533, %v535
        %v543 = vsel %vm444, %v535, %v537
        %v544 = vsel %vm444, %v537, %v539
        %v545 = vsel %vm444, %v539, %v541
        %v550 = vadd.f32 %v494, %v542
        %v551 = vadd.f32 %v495, %v543
        %v552 = vadd.f32 %v496, %v544
        %v553 = vadd.f32 %v497, %v545
        %v554 = vperm.slane %v398, 3
        %v555 = vperm.slane %v399, 3
        %v556 = vperm.slane %v400, 3
        %v557 = vperm.slane %v401, 3
        %562 = vrot.lane.b32.xlu0 %v554, 96
        %v563 = vpop.permute.xlu0 %562
        %564 = vrot.lane.b32.xlu0 %v555, 96
        %v565 = vpop.permute.xlu0 %564
        %566 = vrot.lane.b32.xlu0 %v556, 96
        %v567 = vpop.permute.xlu0 %566
        %568 = vrot.lane.b32.xlu0 %v557, 96
        %v569 = vpop.permute.xlu0 %568
        %v570 = vsel %vm444, %v563, %v565
        %v571 = vsel %vm444, %v565, %v567
        %v572 = vsel %vm444, %v567, %v569
        %v578 = vmul.f32 %v407, %v563
        %v579 = vmul.f32 %v408, %v570
        %v580 = vmul.f32 %v409, %v571
        %v581 = vmul.f32 %v410, %v572
        %v582 = vmul.f32 %v411, %v569
        %v583 = vmul.f32 %v412, %v563
        %v584 = vmul.f32 %v413, %v570
        %v585 = vmul.f32 %v414, %v571
        %v586 = vmul.f32 %v415, %v572
        %v587 = vmul.f32 %v416, %v569
        %vm598 = vcmask 1046528
        %v599 = vrot.slane %v578, 1
        %v600 = vrot.slane %v583, 1
        %v601 = vsel %vm598, %v599, %v600
        %v602 = vrot.slane %v579, 1
        %v603 = vrot.slane %v584, 1
        %v604 = vsel %vm598, %v602, %v603
        %v605 = vrot.slane %v580, 1
        %v606 = vrot.slane %v585, 1
        %v607 = vsel %vm598, %v605, %v606
        %v608 = vrot.slane %v581, 1
        %v609 = vrot.slane %v586, 1
        %v610 = vsel %vm598, %v608, %v609
        %v611 = vrot.slane %v582, 1
        %v612 = vrot.slane %v587, 1
        %v613 = vsel %vm598, %v611, %v612
        %614 = vrot.lane.b32.xlu0 %v601, 32
        %v615 = vpop.permute.xlu0 %614
        %616 = vrot.lane.b32.xlu0 %v604, 32
        %v617 = vpop.permute.xlu0 %616
        %618 = vrot.lane.b32.xlu0 %v607, 32
        %v619 = vpop.permute.xlu0 %618
        %620 = vrot.lane.b32.xlu0 %v610, 32
        %v621 = vpop.permute.xlu0 %620
        %622 = vrot.lane.b32.xlu0 %v613, 32
        %v623 = vpop.permute.xlu0 %622
        %v624 = vsel %vm473, %v615, %v617
        %v625 = vsel %vm473, %v617, %v619
        %v626 = vsel %vm473, %v619, %v621
        %v627 = vsel %vm473, %v621, %v623
        %v632 = vadd.f32 %v550, %v624
        %v633 = vadd.f32 %v551, %v625
        %v634 = vadd.f32 %v552, %v626
        %v635 = vadd.f32 %v553, %v627
        %v636 = vperm.slane %v398, 4
        %v637 = vperm.slane %v399, 4
        %v638 = vperm.slane %v400, 4
        %v639 = vperm.slane %v401, 4
        %v640 = vmul.f32 %v408, %v636
        %v641 = vmul.f32 %v409, %v637
        %v642 = vmul.f32 %v410, %v638
        %v643 = vmul.f32 %v411, %v639
        %v644 = vmul.f32 %v413, %v636
        %v645 = vmul.f32 %v414, %v637
        %v646 = vmul.f32 %v415, %v638
        %v647 = vmul.f32 %v416, %v639
        %v656 = vrot.slane %v640, 1
        %v657 = vrot.slane %v644, 1
        %v658 = vsel %vm598, %v656, %v657
        %v659 = vrot.slane %v641, 1
        %v660 = vrot.slane %v645, 1
        %v661 = vsel %vm598, %v659, %v660
        %v662 = vrot.slane %v642, 1
        %v663 = vrot.slane %v646, 1
        %v664 = vsel %vm598, %v662, %v663
        %v665 = vrot.slane %v643, 1
        %v666 = vrot.slane %v647, 1
        %v667 = vsel %vm598, %v665, %v666
        %v672 = vadd.f32 %v632, %v658
        %v673 = vadd.f32 %v633, %v661
        %v674 = vadd.f32 %v634, %v664
        %v675 = vadd.f32 %v635, %v667
        %v676 = vperm.slane %v398, 5
        %v677 = vperm.slane %v399, 5
        %v678 = vperm.slane %v400, 5
        %v679 = vperm.slane %v401, 5
        %684 = vrot.lane.b32.xlu0 %v676, 32
        %v685 = vpop.permute.xlu0 %684
        %686 = vrot.lane.b32.xlu0 %v677, 32
        %v687 = vpop.permute.xlu0 %686
        %688 = vrot.lane.b32.xlu0 %v678, 32
        %v689 = vpop.permute.xlu0 %688
        %690 = vrot.lane.b32.xlu0 %v679, 32
        %v691 = vpop.permute.xlu0 %690
        %v692 = vsel %vm473, %v685, %v687
        %v693 = vsel %vm473, %v687, %v689
        %v694 = vsel %vm473, %v689, %v691
        %v700 = vmul.f32 %v408, %v685
        %v701 = vmul.f32 %v409, %v692
        %v702 = vmul.f32 %v410, %v693
        %v703 = vmul.f32 %v411, %v694
        %v704 = vmul.f32 %v417, %v691
        %v705 = vmul.f32 %v413, %v685
        %v706 = vmul.f32 %v414, %v692
        %v707 = vmul.f32 %v415, %v693
        %v708 = vmul.f32 %v416, %v694
        %v709 = vmul.f32 %v418, %v691
        %v720 = vrot.slane %v700, 1
        %v721 = vrot.slane %v705, 1
        %v722 = vsel %vm598, %v720, %v721
        %v723 = vrot.slane %v701, 1
        %v724 = vrot.slane %v706, 1
        %v725 = vsel %vm598, %v723, %v724
        %v726 = vrot.slane %v702, 1
        %v727 = vrot.slane %v707, 1
        %v728 = vsel %vm598, %v726, %v727
        %v729 = vrot.slane %v703, 1
        %v730 = vrot.slane %v708, 1
        %v731 = vsel %vm598, %v729, %v730
        %v732 = vrot.slane %v704, 1
        %v733 = vrot.slane %v709, 1
        %v734 = vsel %vm598, %v732, %v733
        %735 = vrot.lane.b32.xlu0 %v722, 96
        %v736 = vpop.permute.xlu0 %735
        %737 = vrot.lane.b32.xlu0 %v725, 96
        %v738 = vpop.permute.xlu0 %737
        %739 = vrot.lane.b32.xlu0 %v728, 96
        %v740 = vpop.permute.xlu0 %739
        %741 = vrot.lane.b32.xlu0 %v731, 96
        %v742 = vpop.permute.xlu0 %741
        %743 = vrot.lane.b32.xlu0 %v734, 96
        %v744 = vpop.permute.xlu0 %743
        %v745 = vsel %vm444, %v736, %v738
        %v746 = vsel %vm444, %v738, %v740
        %v747 = vsel %vm444, %v740, %v742
        %v748 = vsel %vm444, %v742, %v744
        %v753 = vadd.f32 %v672, %v745
        %v754 = vadd.f32 %v673, %v746
        %v755 = vadd.f32 %v674, %v747
        %v756 = vadd.f32 %v675, %v748
        %v757 = vperm.slane %v398, 6
        %v758 = vperm.slane %v399, 6
        %v759 = vperm.slane %v400, 6
        %v760 = vperm.slane %v401, 6
        %765 = vrot.lane.b32.xlu0 %v757, 96
        %v766 = vpop.permute.xlu0 %765
        %767 = vrot.lane.b32.xlu0 %v758, 96
        %v768 = vpop.permute.xlu0 %767
        %769 = vrot.lane.b32.xlu0 %v759, 96
        %v770 = vpop.permute.xlu0 %769
        %771 = vrot.lane.b32.xlu0 %v760, 96
        %v772 = vpop.permute.xlu0 %771
        %v773 = vsel %vm444, %v766, %v768
        %v774 = vsel %vm444, %v768, %v770
        %v775 = vsel %vm444, %v770, %v772
        %v781 = vmul.f32 %v407, %v766
        %v782 = vmul.f32 %v408, %v773
        %v783 = vmul.f32 %v409, %v774
        %v784 = vmul.f32 %v410, %v775
        %v785 = vmul.f32 %v411, %v772
        %v786 = vmul.f32 %v412, %v766
        %v787 = vmul.f32 %v413, %v773
        %v788 = vmul.f32 %v414, %v774
        %v789 = vmul.f32 %v415, %v775
        %v790 = vmul.f32 %v416, %v772
        %vm801 = vcmask 1045504
        %v802 = vrot.slane %v781, 2
        %v803 = vrot.slane %v786, 2
        %v804 = vsel %vm801, %v802, %v803
        %v805 = vrot.slane %v782, 2
        %v806 = vrot.slane %v787, 2
        %v807 = vsel %vm801, %v805, %v806
        %v808 = vrot.slane %v783, 2
        %v809 = vrot.slane %v788, 2
        %v810 = vsel %vm801, %v808, %v809
        %v811 = vrot.slane %v784, 2
        %v812 = vrot.slane %v789, 2
        %v813 = vsel %vm801, %v811, %v812
        %v814 = vrot.slane %v785, 2
        %v815 = vrot.slane %v790, 2
        %v816 = vsel %vm801, %v814, %v815
        %817 = vrot.lane.b32.xlu0 %v804, 32
        %v818 = vpop.permute.xlu0 %817
        %819 = vrot.lane.b32.xlu0 %v807, 32
        %v820 = vpop.permute.xlu0 %819
        %821 = vrot.lane.b32.xlu0 %v810, 32
        %v822 = vpop.permute.xlu0 %821
        %823 = vrot.lane.b32.xlu0 %v813, 32
        %v824 = vpop.permute.xlu0 %823
        %825 = vrot.lane.b32.xlu0 %v816, 32
        %v826 = vpop.permute.xlu0 %825
        %v827 = vsel %vm473, %v818, %v820
        %v828 = vsel %vm473, %v820, %v822
        %v829 = vsel %vm473, %v822, %v824
        %v830 = vsel %vm473, %v824, %v826
        %v835 = vadd.f32 %v753, %v827
        %v836 = vadd.f32 %v754, %v828
        %v837 = vadd.f32 %v755, %v829
        %v838 = vadd.f32 %v756, %v830
        %v839 = vperm.slane %v398, 7
        %v840 = vperm.slane %v399, 7
        %v841 = vperm.slane %v400, 7
        %v842 = vperm.slane %v401, 7
        %v843 = vmul.f32 %v408, %v839
        %v844 = vmul.f32 %v409, %v840
        %v845 = vmul.f32 %v410, %v841
        %v846 = vmul.f32 %v411, %v842
        %v847 = vmul.f32 %v413, %v839
        %v848 = vmul.f32 %v414, %v840
        %v849 = vmul.f32 %v415, %v841
        %v850 = vmul.f32 %v416, %v842
        %v859 = vrot.slane %v843, 2
        %v860 = vrot.slane %v847, 2
        %v861 = vsel %vm801, %v859, %v860
        %v862 = vrot.slane %v844, 2
        %v863 = vrot.slane %v848, 2
        %v864 = vsel %vm801, %v862, %v863
        %v865 = vrot.slane %v845, 2
        %v866 = vrot.slane %v849, 2
        %v867 = vsel %vm801, %v865, %v866
        %v868 = vrot.slane %v846, 2
        %v869 = vrot.slane %v850, 2
        %v870 = vsel %vm801, %v868, %v869
        %v875 = vadd.f32 %v835, %v861
        %v876 = vadd.f32 %v836, %v864
        %v877 = vadd.f32 %v837, %v867
        %v878 = vadd.f32 %v838, %v870
        %v879 = vperm.slane %v402, 0
        %v880 = vperm.slane %v403, 0
        %v881 = vperm.slane %v404, 0
        %v882 = vperm.slane %v405, 0
        %887 = vrot.lane.b32.xlu0 %v879, 32
        %v888 = vpop.permute.xlu0 %887
        %889 = vrot.lane.b32.xlu0 %v880, 32
        %v890 = vpop.permute.xlu0 %889
        %891 = vrot.lane.b32.xlu0 %v881, 32
        %v892 = vpop.permute.xlu0 %891
        %893 = vrot.lane.b32.xlu0 %v882, 32
        %v894 = vpop.permute.xlu0 %893
        %v895 = vsel %vm473, %v888, %v890
        %v896 = vsel %vm473, %v890, %v892
        %v897 = vsel %vm473, %v892, %v894
        %v903 = vmul.f32 %v408, %v888
        %v904 = vmul.f32 %v409, %v895
        %v905 = vmul.f32 %v410, %v896
        %v906 = vmul.f32 %v411, %v897
        %v907 = vmul.f32 %v417, %v894
        %v908 = vmul.f32 %v413, %v888
        %v909 = vmul.f32 %v414, %v895
        %v910 = vmul.f32 %v415, %v896
        %v911 = vmul.f32 %v416, %v897
        %v912 = vmul.f32 %v418, %v894
        %v923 = vrot.slane %v903, 2
        %v924 = vrot.slane %v908, 2
        %v925 = vsel %vm801, %v923, %v924
        %v926 = vrot.slane %v904, 2
        %v927 = vrot.slane %v909, 2
        %v928 = vsel %vm801, %v926, %v927
        %v929 = vrot.slane %v905, 2
        %v930 = vrot.slane %v910, 2
        %v931 = vsel %vm801, %v929, %v930
        %v932 = vrot.slane %v906, 2
        %v933 = vrot.slane %v911, 2
        %v934 = vsel %vm801, %v932, %v933
        %v935 = vrot.slane %v907, 2
        %v936 = vrot.slane %v912, 2
        %v937 = vsel %vm801, %v935, %v936
        %938 = vrot.lane.b32.xlu0 %v925, 96
        %v939 = vpop.permute.xlu0 %938
        %940 = vrot.lane.b32.xlu0 %v928, 96
        %v941 = vpop.permute.xlu0 %940
        %942 = vrot.lane.b32.xlu0 %v931, 96
        %v943 = vpop.permute.xlu0 %942
        %944 = vrot.lane.b32.xlu0 %v934, 96
        %v945 = vpop.permute.xlu0 %944
        %946 = vrot.lane.b32.xlu0 %v937, 96
        %v947 = vpop.permute.xlu0 %946
        %v948 = vsel %vm444, %v939, %v941
        %v949 = vsel %vm444, %v941, %v943
        %v950 = vsel %vm444, %v943, %v945
        %v951 = vsel %vm444, %v945, %v947
        %v956 = vadd.f32 %v875, %v948
        %v957 = vadd.f32 %v876, %v949
        %v958 = vadd.f32 %v877, %v950
        %v959 = vadd.f32 %v878, %v951
        %960 = vst [vmem:[%s241] sm:$0xff] %v956
        %961 = vst [vmem:[%s241 + $0x8] sm:$0xff] %v957
        %962 = vst [vmem:[%s241 + $0x10] sm:$0xff] %v958
        %963 = vst [vmem:[%s241 + $0x18] sm:$0xff] %v959
        %v964 = vld [vmem:[#allocation2 + $0x30] sm:$0xff]
        %v965 = vld [vmem:[#allocation2 + $0x38] sm:$0xff]
        %v966 = vld [vmem:[#allocation2 + $0x40] sm:$0xff]
        %v967 = vld [vmem:[#allocation2 + $0x48] sm:$0xff]
        %v968 = vld [vmem:[#allocation2 + $0x50] sm:$0xff]
        %v969 = vld [vmem:[#allocation2 + $0x60] sm:$0x3]
        %v970 = vld [vmem:[#allocation2 + $0x68] sm:$0x3]
        %v971 = vld [vmem:[#allocation2 + $0x70] sm:$0x3]
        %v972 = vld [vmem:[#allocation2 + $0x78] sm:$0x3]
        %v973 = vld [vmem:[#allocation2 + $0x80] sm:$0x3]
        %v974 = vld [vmem:[#allocation2 + $0x58] sm:$0xff]
        %v975 = vld [vmem:[#allocation2 + $0x88] sm:$0x3]
        %v976 = vmul.f32 %v964, %v437
        %v977 = vmul.f32 %v965, %v445
        %v978 = vmul.f32 %v966, %v446
        %v979 = vmul.f32 %v967, %v447
        %v980 = vmul.f32 %v968, %v443
        %986 = vrot.lane.b32.xlu0 %v976, 32
        %v987 = vpop.permute.xlu0 %986
        %988 = vrot.lane.b32.xlu0 %v977, 32
        %v989 = vpop.permute.xlu0 %988
        %990 = vrot.lane.b32.xlu0 %v978, 32
        %v991 = vpop.permute.xlu0 %990
        %992 = vrot.lane.b32.xlu0 %v979, 32
        %v993 = vpop.permute.xlu0 %992
        %994 = vrot.lane.b32.xlu0 %v980, 32
        %v995 = vpop.permute.xlu0 %994
        %v996 = vsel %vm473, %v987, %v989
        %v997 = vsel %vm473, %v989, %v991
        %v998 = vsel %vm473, %v991, %v993
        %v999 = vsel %vm473, %v993, %v995
        %v1004 = vadd.f32 %v420, %v996
        %v1005 = vadd.f32 %v421, %v997
        %v1006 = vadd.f32 %v422, %v998
        %v1007 = vadd.f32 %v423, %v999
        %v1008 = vmul.f32 %v965, %v486
        %v1009 = vmul.f32 %v966, %v487
        %v1010 = vmul.f32 %v967, %v488
        %v1011 = vmul.f32 %v968, %v489
        %v1012 = vadd.f32 %v1004, %v1008
        %v1013 = vadd.f32 %v1005, %v1009
        %v1014 = vadd.f32 %v1006, %v1010
        %v1015 = vadd.f32 %v1007, %v1011
        %v1016 = vmul.f32 %v965, %v507
        %v1017 = vmul.f32 %v966, %v514
        %v1018 = vmul.f32 %v967, %v515
        %v1019 = vmul.f32 %v968, %v516
        %v1020 = vmul.f32 %v974, %v513
        %1026 = vrot.lane.b32.xlu0 %v1016, 96
        %v1027 = vpop.permute.xlu0 %1026
        %1028 = vrot.lane.b32.xlu0 %v1017, 96
        %v1029 = vpop.permute.xlu0 %1028
        %1030 = vrot.lane.b32.xlu0 %v1018, 96
        %v1031 = vpop.permute.xlu0 %1030
        %1032 = vrot.lane.b32.xlu0 %v1019, 96
        %v1033 = vpop.permute.xlu0 %1032
        %1034 = vrot.lane.b32.xlu0 %v1020, 96
        %v1035 = vpop.permute.xlu0 %1034
        %v1036 = vsel %vm444, %v1027, %v1029
        %v1037 = vsel %vm444, %v1029, %v1031
        %v1038 = vsel %vm444, %v1031, %v1033
        %v1039 = vsel %vm444, %v1033, %v1035
        %v1044 = vadd.f32 %v1012, %v1036
        %v1045 = vadd.f32 %v1013, %v1037
        %v1046 = vadd.f32 %v1014, %v1038
        %v1047 = vadd.f32 %v1015, %v1039
        %v1048 = vmul.f32 %v964, %v563
        %v1049 = vmul.f32 %v965, %v570
        %v1050 = vmul.f32 %v966, %v571
        %v1051 = vmul.f32 %v967, %v572
        %v1052 = vmul.f32 %v968, %v569
        %v1053 = vmul.f32 %v969, %v563
        %v1054 = vmul.f32 %v970, %v570
        %v1055 = vmul.f32 %v971, %v571
        %v1056 = vmul.f32 %v972, %v572
        %v1057 = vmul.f32 %v973, %v569
        %v1068 = vrot.slane %v1048, 1
        %v1069 = vrot.slane %v1053, 1
        %v1070 = vsel %vm598, %v1068, %v1069
        %v1071 = vrot.slane %v1049, 1
        %v1072 = vrot.slane %v1054, 1
        %v1073 = vsel %vm598, %v1071, %v1072
        %v1074 = vrot.slane %v1050, 1
        %v1075 = vrot.slane %v1055, 1
        %v1076 = vsel %vm598, %v1074, %v1075
        %v1077 = vrot.slane %v1051, 1
        %v1078 = vrot.slane %v1056, 1
        %v1079 = vsel %vm598, %v1077, %v1078
        %v1080 = vrot.slane %v1052, 1
        %v1081 = vrot.slane %v1057, 1
        %v1082 = vsel %vm598, %v1080, %v1081
        %1083 = vrot.lane.b32.xlu0 %v1070, 32
        %v1084 = vpop.permute.xlu0 %1083
        %1085 = vrot.lane.b32.xlu0 %v1073, 32
        %v1086 = vpop.permute.xlu0 %1085
        %1087 = vrot.lane.b32.xlu0 %v1076, 32
        %v1088 = vpop.permute.xlu0 %1087
        %1089 = vrot.lane.b32.xlu0 %v1079, 32
        %v1090 = vpop.permute.xlu0 %1089
        %1091 = vrot.lane.b32.xlu0 %v1082, 32
        %v1092 = vpop.permute.xlu0 %1091
        %v1093 = vsel %vm473, %v1084, %v1086
        %v1094 = vsel %vm473, %v1086, %v1088
        %v1095 = vsel %vm473, %v1088, %v1090
        %v1096 = vsel %vm473, %v1090, %v1092
        %v1101 = vadd.f32 %v1044, %v1093
        %v1102 = vadd.f32 %v1045, %v1094
        %v1103 = vadd.f32 %v1046, %v1095
        %v1104 = vadd.f32 %v1047, %v1096
        %v1105 = vmul.f32 %v965, %v636
        %v1106 = vmul.f32 %v966, %v637
        %v1107 = vmul.f32 %v967, %v638
        %v1108 = vmul.f32 %v968, %v639
        %v1109 = vmul.f32 %v970, %v636
        %v1110 = vmul.f32 %v971, %v637
        %v1111 = vmul.f32 %v972, %v638
        %v1112 = vmul.f32 %v973, %v639
        %v1121 = vrot.slane %v1105, 1
        %v1122 = vrot.slane %v1109, 1
        %v1123 = vsel %vm598, %v1121, %v1122
        %v1124 = vrot.slane %v1106, 1
        %v1125 = vrot.slane %v1110, 1
        %v1126 = vsel %vm598, %v1124, %v1125
        %v1127 = vrot.slane %v1107, 1
        %v1128 = vrot.slane %v1111, 1
        %v1129 = vsel %vm598, %v1127, %v1128
        %v1130 = vrot.slane %v1108, 1
        %v1131 = vrot.slane %v1112, 1
        %v1132 = vsel %vm598, %v1130, %v1131
        %v1137 = vadd.f32 %v1101, %v1123
        %v1138 = vadd.f32 %v1102, %v1126
        %v1139 = vadd.f32 %v1103, %v1129
        %v1140 = vadd.f32 %v1104, %v1132
        %v1141 = vmul.f32 %v965, %v685
        %v1142 = vmul.f32 %v966, %v692
        %v1143 = vmul.f32 %v967, %v693
        %v1144 = vmul.f32 %v968, %v694
        %v1145 = vmul.f32 %v974, %v691
        %v1146 = vmul.f32 %v970, %v685
        %v1147 = vmul.f32 %v971, %v692
        %v1148 = vmul.f32 %v972, %v693
        %v1149 = vmul.f32 %v973, %v694
        %v1150 = vmul.f32 %v975, %v691
        %v1161 = vrot.slane %v1141, 1
        %v1162 = vrot.slane %v1146, 1
        %v1163 = vsel %vm598, %v1161, %v1162
        %v1164 = vrot.slane %v1142, 1
        %v1165 = vrot.slane %v1147, 1
        %v1166 = vsel %vm598, %v1164, %v1165
        %v1167 = vrot.slane %v1143, 1
        %v1168 = vrot.slane %v1148, 1
        %v1169 = vsel %vm598, %v1167, %v1168
        %v1170 = vrot.slane %v1144, 1
        %v1171 = vrot.slane %v1149, 1
        %v1172 = vsel %vm598, %v1170, %v1171
        %v1173 = vrot.slane %v1145, 1
        %v1174 = vrot.slane %v1150, 1
        %v1175 = vsel %vm598, %v1173, %v1174
        %1176 = vrot.lane.b32.xlu0 %v1163, 96
        %v1177 = vpop.permute.xlu0 %1176
        %1178 = vrot.lane.b32.xlu0 %v1166, 96
        %v1179 = vpop.permute.xlu0 %1178
        %1180 = vrot.lane.b32.xlu0 %v1169, 96
        %v1181 = vpop.permute.xlu0 %1180
        %1182 = vrot.lane.b32.xlu0 %v1172, 96
        %v1183 = vpop.permute.xlu0 %1182
        %1184 = vrot.lane.b32.xlu0 %v1175, 96
        %v1185 = vpop.permute.xlu0 %1184
        %v1186 = vsel %vm444, %v1177, %v1179
        %v1187 = vsel %vm444, %v1179, %v1181
        %v1188 = vsel %vm444, %v1181, %v1183
        %v1189 = vsel %vm444, %v1183, %v1185
        %v1194 = vadd.f32 %v1137, %v1186
        %v1195 = vadd.f32 %v1138, %v1187
        %v1196 = vadd.f32 %v1139, %v1188
        %v1197 = vadd.f32 %v1140, %v1189
        %v1198 = vmul.f32 %v964, %v766
        %v1199 = vmul.f32 %v965, %v773
        %v1200 = vmul.f32 %v966, %v774
        %v1201 = vmul.f32 %v967, %v775
        %v1202 = vmul.f32 %v968, %v772
        %v1203 = vmul.f32 %v969, %v766
        %v1204 = vmul.f32 %v970, %v773
        %v1205 = vmul.f32 %v971, %v774
        %v1206 = vmul.f32 %v972, %v775
        %v1207 = vmul.f32 %v973, %v772
        %v1218 = vrot.slane %v1198, 2
        %v1219 = vrot.slane %v1203, 2
        %v1220 = vsel %vm801, %v1218, %v1219
        %v1221 = vrot.slane %v1199, 2
        %v1222 = vrot.slane %v1204, 2
        %v1223 = vsel %vm801, %v1221, %v1222
        %v1224 = vrot.slane %v1200, 2
        %v1225 = vrot.slane %v1205, 2
        %v1226 = vsel %vm801, %v1224, %v1225
        %v1227 = vrot.slane %v1201, 2
        %v1228 = vrot.slane %v1206, 2
        %v1229 = vsel %vm801, %v1227, %v1228
        %v1230 = vrot.slane %v1202, 2
        %v1231 = vrot.slane %v1207, 2
        %v1232 = vsel %vm801, %v1230, %v1231
        %1233 = vrot.lane.b32.xlu0 %v1220, 32
        %v1234 = vpop.permute.xlu0 %1233
        %1235 = vrot.lane.b32.xlu0 %v1223, 32
        %v1236 = vpop.permute.xlu0 %1235
        %1237 = vrot.lane.b32.xlu0 %v1226, 32
        %v1238 = vpop.permute.xlu0 %1237
        %1239 = vrot.lane.b32.xlu0 %v1229, 32
        %v1240 = vpop.permute.xlu0 %1239
        %1241 = vrot.lane.b32.xlu0 %v1232, 32
        %v1242 = vpop.permute.xlu0 %1241
        %v1243 = vsel %vm473, %v1234, %v1236
        %v1244 = vsel %vm473, %v1236, %v1238
        %v1245 = vsel %vm473, %v1238, %v1240
        %v1246 = vsel %vm473, %v1240, %v1242
        %v1251 = vadd.f32 %v1194, %v1243
        %v1252 = vadd.f32 %v1195, %v1244
        %v1253 = vadd.f32 %v1196, %v1245
        %v1254 = vadd.f32 %v1197, %v1246
        %v1255 = vmul.f32 %v965, %v839
        %v1256 = vmul.f32 %v966, %v840
        %v1257 = vmul.f32 %v967, %v841
        %v1258 = vmul.f32 %v968, %v842
        %v1259 = vmul.f32 %v970, %v839
        %v1260 = vmul.f32 %v971, %v840
        %v1261 = vmul.f32 %v972, %v841
        %v1262 = vmul.f32 %v973, %v842
        %v1271 = vrot.slane %v1255, 2
        %v1272 = vrot.slane %v1259, 2
        %v1273 = vsel %vm801, %v1271, %v1272
        %v1274 = vrot.slane %v1256, 2
        %v1275 = vrot.slane %v1260, 2
        %v1276 = vsel %vm801, %v1274, %v1275
        %v1277 = vrot.slane %v1257, 2
        %v1278 = vrot.slane %v1261, 2
        %v1279 = vsel %vm801, %v1277, %v1278
        %v1280 = vrot.slane %v1258, 2
        %v1281 = vrot.slane %v1262, 2
        %v1282 = vsel %vm801, %v1280, %v1281
        %v1287 = vadd.f32 %v1251, %v1273
        %v1288 = vadd.f32 %v1252, %v1276
        %v1289 = vadd.f32 %v1253, %v1279
        %v1290 = vadd.f32 %v1254, %v1282
        %v1291 = vmul.f32 %v965, %v888
        %v1292 = vmul.f32 %v966, %v895
        %v1293 = vmul.f32 %v967, %v896
        %v1294 = vmul.f32 %v968, %v897
        %v1295 = vmul.f32 %v974, %v894
        %v1296 = vmul.f32 %v970, %v888
        %v1297 = vmul.f32 %v971, %v895
        %v1298 = vmul.f32 %v972, %v896
        %v1299 = vmul.f32 %v973, %v897
        %v1300 = vmul.f32 %v975, %v894
        %v1311 = vrot.slane %v1291, 2
        %v1312 = vrot.slane %v1296, 2
        %v1313 = vsel %vm801, %v1311, %v1312
        %v1314 = vrot.slane %v1292, 2
        %v1315 = vrot.slane %v1297, 2
        %v1316 = vsel %vm801, %v1314, %v1315
        %v1317 = vrot.slane %v1293, 2
        %v1318 = vrot.slane %v1298, 2
        %v1319 = vsel %vm801, %v1317, %v1318
        %v1320 = vrot.slane %v1294, 2
        %v1321 = vrot.slane %v1299, 2
        %v1322 = vsel %vm801, %v1320, %v1321
        %v1323 = vrot.slane %v1295, 2
        %v1324 = vrot.slane %v1300, 2
        %v1325 = vsel %vm801, %v1323, %v1324
        %1326 = vrot.lane.b32.xlu0 %v1313, 96
        %v1327 = vpop.permute.xlu0 %1326
        %1328 = vrot.lane.b32.xlu0 %v1316, 96
        %v1329 = vpop.permute.xlu0 %1328
        %1330 = vrot.lane.b32.xlu0 %v1319, 96
        %v1331 = vpop.permute.xlu0 %1330
        %1332 = vrot.lane.b32.xlu0 %v1322, 96
        %v1333 = vpop.permute.xlu0 %1332
        %1334 = vrot.lane.b32.xlu0 %v1325, 96
        %v1335 = vpop.permute.xlu0 %1334
        %v1336 = vsel %vm444, %v1327, %v1329
        %v1337 = vsel %vm444, %v1329, %v1331
        %v1338 = vsel %vm444, %v1331, %v1333
        %v1339 = vsel %vm444, %v1333, %v1335
        %v1344 = vadd.f32 %v1287, %v1336
        %v1345 = vadd.f32 %v1288, %v1337
        %v1346 = vadd.f32 %v1289, %v1338
        %v1347 = vadd.f32 %v1290, %v1339
        %1348 = vst [vmem:[%s241 + $0x20] sm:$0xff] %v1344
        %1349 = vst [vmem:[%s241 + $0x28] sm:$0xff] %v1345
        %1350 = vst [vmem:[%s241 + $0x30] sm:$0xff] %v1346
        %1351 = vst [vmem:[%s241 + $0x38] sm:$0xff] %v1347
        %s1352 = sand.u32 %s114, 1
        %s1353 = scalar_lea.sflag [#allocation7], %s1352
        %s1354 = sand.u32 %s114, 1
        %s1355 = smul.addr %s1354, 64
        %s1356 = scalar_lea.vmem [#allocation11], %s1355
        // Predicated region
        $region69: #{tpu_custom_call.1} parent=31 // pred_check
          %p1357 = pneg %p124
        $region70: #{tpu_custom_call.1} parent=31 // pred_check_branch
          %1359 = sbr.rel (%p1357) target = $region72
        $region71: #{tpu_custom_call.1} parent=31 // pred_region
          %s1360 = smul.u32 2, %s27
          %1362 = vsyncadd %s1353, 0
          %s1363 = smul.addr %s1360, 4
          %s1364 = smul.addr %s26, 8
          %s1365 = sadd.s32 %s1363, %s1364
          %s1366 = smul.addr %s1365, 8
          %s1367 = scalar_lea.hbm %s4, %s1366
          %s1368 = sshll.u32 %s1356, 4
          %s1369 = int_to_ptr.vmem [resolvable:$true] %s1368
          %s1370 = sshll.u32 %s1367, 4
          %s1371 = int_to_ptr.hbm [resolvable:$true] %s1370
          %1376 = dma.vmem_to_hbm [thread:$0]  %s1369, 1024, %s1371, %s1353, 512, 512, 32
        $region72: #{tpu_custom_call.1} parent=31 // pred_fallthru
          _
      $region32: #{tpu_custom_call.1} parent=5 // pred_fallthru
        _
      %p1377 = scmp.le.s32.totalorder 2, %s17
      // Predicated region
      $region73: #{tpu_custom_call.1} parent=5 // pred_check
        %p1378 = pneg %p1377
      $region74: #{tpu_custom_call.1} parent=5 // pred_check_branch
        %1380 = sbr.rel (%p1378) target = $region76
      $region75: #{tpu_custom_call.1} parent=5 // pred_region
        %s1381 = ssub.s32 %s17, 2
        // Predicated region
        $region77: #{tpu_custom_call.1} parent=75 // pred_check
          %p1382 = pneg %p130
        $region78: #{tpu_custom_call.1} parent=75 // pred_check_branch
          %1384 = sbr.rel (%p1382) target = $region80
        $region79: #{tpu_custom_call.1} parent=75 // pred_region
          %s1385 = sand.u32 %s115, 1
          %s1386 = scalar_lea.sflag [#allocation7], %s1385
          %s1387 = sand.u32 %s115, 1
          %s1388 = smul.addr %s1387, 64
          %s1389 = scalar_lea.vmem [#allocation11], %s1388
          %1391 = dma.done %s1386, 1024
        $region80: #{tpu_custom_call.1} parent=75 // pred_fallthru
          _
      $region76: #{tpu_custom_call.1} parent=5 // pred_fallthru
        _
    $region6: #{tpu_custom_call.1} parent=1 // loop_footer
      %s21 = sadd.s32 1, %s17
    $region7: #{tpu_custom_call.1} parent=1 // loop_footer_branch
      %16 = sbr.rel target = $region3
    $region8: #{tpu_custom_call.1} parent=1 // loop_exit
      _
    %1392 = vsyncpa [#allocation6], 1
    %s1393 = scalar_lea.sflag [#allocation6], 1
    %1394 = vsyncpa %s1393, 1
    %1395 = vsyncpa [#allocation9], 1
    %1396 = vsyncpa [#allocation7], 1
    %s1397 = scalar_lea.sflag [#allocation7], 1
    %1398 = vsyncpa %s1397, 1
  %1399 = vsyncmov [#allocation4]
  %s1400 = vpop.sfrf %1399
  %p1401 = scmp.eq.s32.totalorder %s1400, 0
  %p1402 = pneg %p1401
  %1404 = shalt.err (%p1402)
  %s1405 = scalar_lea.sflag [#allocation4], 1
  %1406 = vsyncmov %s1405
  %s1407 = vpop.sfrf %1406
  %p1408 = scmp.eq.s32.totalorder %s1407, 0
  %p1409 = pneg %p1408
  %1411 = shalt.err (%p1409)

</llo_original>
